<compile_context>
chip_gen: v7x
topology: tpu7x:2x2x1
jax: 0.10.0
libtpu: 0.0.40
codegen_flags: <defaults>
</compile_context>

<pallas_src>
import math

import jax
import jax.numpy as jnp
import numpy as np
from jax.experimental import pallas as pl
from jax.experimental.pallas import tpu as pltpu

# ---------------- model config (small, consistent with module args) --------
N_ENTITY = 64      # args.n_entity
N_RELATION = 32    # args.n_relation
DIM = 32           # args.dim
N_HOP = 1          # args.n_hop (hop-0 model only uses hop 0 heads)
B = 8              # batch
M = 8              # n_memory (triples per user at hop 0)


# ---------------- Pallas kernel --------------------------------------------
def hop0_kernel(table_t_ref, items_ref, heads_ref, labels_ref,
                scores_ref, loss_ref):
    # table_t_ref: (DIM, N_ENTITY+1) f32 VMEM  -- entity table, pre-transposed
    # items_ref:   (1, B)  int32 VMEM          -- item entity ids (batch on lanes)
    # heads_ref:   (M, B)  int32 VMEM          -- hop-0 head ids (batch on lanes)
    # labels_ref:  (1, B)  f32 VMEM
    # scores_ref:  (1, B)  f32 VMEM (output, lane-dense: batch on lane axis)
    # loss_ref:    (1, 1)  f32 VMEM (output, mean BCE)
    ne = N_ENTITY + 1
    ent_ids = jax.lax.broadcasted_iota(jnp.int32, (ne, B), 0)    # entity id / sublane

    # One-hot selector for items and integer count matrix for the hop-0 head
    # multiset, built in-register (VPU compares only; no scalar-indexed loads).
    items_row = items_ref[...]                                   # (1, B)
    onehot_t = jnp.where(ent_ids == items_row, 1.0, 0.0)         # (NE, B)

    heads = heads_ref[...]                                       # (M, B)
    counts_t = jnp.zeros((ne, B), jnp.float32)
    for m in range(M):   # M is a small static int -> fully unrolled VPU work
        counts_t = counts_t + jnp.where(ent_ids == heads[m:m + 1, :], 1.0, 0.0)

    # Batched gather + sum-over-memory as two tiny standard MXU matmuls.
    # precision=HIGHEST keeps the f32 table exact (the one-hot / count side is
    # exact in bf16 anyway); default precision would miss 1e-5 parity.
    table_t = table_t_ref[...]                                   # (D, NE)
    ev_t = jnp.dot(table_t, onehot_t,
                   precision=jax.lax.Precision.HIGHEST,
                   preferred_element_type=jnp.float32)           # (D, B)
    usum_t = jnp.dot(table_t, counts_t,
                     precision=jax.lax.Precision.HIGHEST,
                     preferred_element_type=jnp.float32)         # (D, B)

    # s_b = (1/M) * sum_d e_v[b,d] * (sum_m h[b,m,d]) : one elementwise
    # multiply + ONE sublane reduce -> lane-dense (1, B) logit row.
    s_row = jnp.sum(ev_t * usum_t, axis=0, keepdims=True) * (1.0 / M)

    p = jax.nn.sigmoid(s_row)
    scores_ref[...] = p                                          # lane-dense store

    # nn.BCELoss(mean), matching torch semantics including the -100 log clamp.
    y = labels_ref[...]                                          # (1, B)
    log_p = jnp.maximum(jnp.log(p), -100.0)
    log_1mp = jnp.maximum(jnp.log(1.0 - p), -100.0)
    loss_ref[...] = jnp.mean(-(y * log_p + (1.0 - y) * log_1mp),
                             keepdims=True)                      # (1, 1)


# ---------------- wrapper ----------------------------------------------------
@jax.jit
def hop0_forward(entity_table, items, labels, user_hop0_heads):
    """Returns dict(scores=(B,), base_loss=(), loss=()) like HOP0_CKAN.forward."""
    # Layout plumbing only (batch -> lane axis, table -> (D, NE)); no compute.
    table_t = jnp.asarray(entity_table, jnp.float32).T           # (D, NE)
    items_row = items.astype(jnp.int32).reshape(1, B)            # (1, B)
    heads_t = user_hop0_heads.astype(jnp.int32).T                # (M, B)
    labels_row = labels.astype(jnp.float32).reshape(1, B)        # (1, B)

    scores_row, loss = pl.pallas_call(
        hop0_kernel,
        out_shape=(
            jax.ShapeDtypeStruct((1, B), jnp.float32),
            jax.ShapeDtypeStruct((1, 1), jnp.float32),
        ),
        grid=(1,),
        in_specs=[
            # Whole (transposed) entity table in VMEM: ~16 KB padded here.
            # TODO(synk): for realistic n_entity, switch to
            # memory_space=pl.ANY + pltpu.make_async_copy DMA-gather of only
            # the B + B*M needed rows (and/or raise vmem_limit_bytes); the
            # whole-table design caps out first on v7x (64 MiB physical,
            # 32 MiB default scoped, double-buffered input).
            pl.BlockSpec((DIM, N_ENTITY + 1), lambda i: (0, 0)),
            pl.BlockSpec((1, B), lambda i: (0, 0)),
            pl.BlockSpec((M, B), lambda i: (0, 0)),
            pl.BlockSpec((1, B), lambda i: (0, 0)),
        ],
        out_specs=(
            pl.BlockSpec((1, B), lambda i: (0, 0)),
            pl.BlockSpec((1, 1), lambda i: (0, 0)),
        ),
        # At realistic batch sizes: grid over batch tiles (>=128 wide on the
        # lane axis), keep the table BlockSpec index_map at (0,0) so it stays
        # resident, and this "parallel" axis then shards across v7x's 2 TCs.
        # With grid=(1,) it is a no-op on every chip.
        compiler_params=pltpu.CompilerParams(
            dimension_semantics=("parallel",)),
    )(table_t, items_row, heads_t, labels_row)

    scores = scores_row.reshape(B)
    loss = loss.reshape(())
    return dict(scores=scores, base_loss=loss, loss=loss)


# ---------------- deterministic parameter init -----------------------------
def xavier_uniform(key, shape):
    # torch xavier_uniform_ on 2-D weight: fan_out = shape[0], fan_in = shape[1]
    fan_out, fan_in = shape
    bound = math.sqrt(6.0 / (fan_in + fan_out))
    return jax.random.uniform(key, shape, jnp.float32, -bound, bound)


if __name__ == "__main__":
    key = jax.random.PRNGKey(0)
    k_ent, k_rel, k_a0, k_a1, k_a2, k_items, k_labels, k_uh = jax.random.split(key, 8)

    # parameters (nn.Embedding / nn.Linear weights), deterministically init'd
    entity_table = xavier_uniform(k_ent, (N_ENTITY + 1, DIM))
    relation_table = xavier_uniform(k_rel, (N_RELATION + 1, DIM))      # unused in HOP0 forward
    attn_w0 = xavier_uniform(k_a0, (DIM, DIM * 2))                     # unused in HOP0 forward
    attn_w1 = xavier_uniform(k_a1, (DIM, DIM))                         # unused in HOP0 forward
    attn_w2 = xavier_uniform(k_a2, (1, DIM))                           # unused in HOP0 forward
    # TODO(synk): _knowledge_attention / relation_emb are never invoked by
    # HOP0_CKAN.forward, so they are initialized but not lowered to a kernel.

    # inputs
    items = jax.random.randint(k_items, (B,), 0, N_ENTITY + 1)
    labels = jax.random.randint(k_labels, (B,), 0, 2)
    user_hop0_heads = jax.random.randint(k_uh, (B, M), 0, N_ENTITY + 1)

    out = hop0_forward(entity_table, items, labels, user_hop0_heads)
    jax.block_until_ready(out)

    # lightweight correctness check vs. pure-JAX reference
    e_u_ref = entity_table[user_hop0_heads].mean(axis=1)
    e_v_ref = entity_table[items]
    scores_ref = jax.nn.sigmoid(jnp.sum(e_u_ref * e_v_ref, axis=-1))
    y = labels.astype(jnp.float32)
    loss_ref = jnp.mean(-(y * jnp.log(scores_ref) + (1 - y) * jnp.log(1 - scores_ref)))
    np.testing.assert_allclose(np.asarray(out["scores"]), np.asarray(scores_ref),
                               rtol=1e-5, atol=1e-5)
    np.testing.assert_allclose(np.asarray(out["loss"]), np.asarray(loss_ref),
                               rtol=1e-5, atol=1e-5)

    print("KERNEL_OK")
</pallas_src>

<mosaic_0001>
module attributes {stable_mosaic.version = 11 : i64} {
  func.func @hop0_kernel(%arg0: i32, %arg1: memref<32x65xf32, #tpu.memory_space<vmem>>, %arg2: memref<1x8xi32, #tpu.memory_space<vmem>>, %arg3: memref<8x8xi32, #tpu.memory_space<vmem>>, %arg4: memref<1x8xf32, #tpu.memory_space<vmem>>, %arg5: memref<1x8xf32, #tpu.memory_space<vmem>>, %arg6: memref<1x1xf32, #tpu.memory_space<vmem>>) attributes {dimension_semantics = [#tpu.dimension_semantics<parallel>], iteration_bounds = array<i64: 1>, scalar_prefetch = 0 : i64, scratch_operands = 0 : i64, tpu.core_type = #tpu.core_type<tc>, window_params = [{pipeline_mode = #tpu.pipeline_mode<synchronous>, transform_indices = @transform_0, window_bounds = array<i64: 32, 65>}, {pipeline_mode = #tpu.pipeline_mode<synchronous>, transform_indices = @transform_1, window_bounds = array<i64: 1, 8>}, {pipeline_mode = #tpu.pipeline_mode<synchronous>, transform_indices = @transform_2, window_bounds = array<i64: 8, 8>}, {pipeline_mode = #tpu.pipeline_mode<synchronous>, transform_indices = @transform_3, window_bounds = array<i64: 1, 8>}, {pipeline_mode = #tpu.pipeline_mode<synchronous>, transform_indices = @transform_4, window_bounds = array<i64: 1, 8>}, {pipeline_mode = #tpu.pipeline_mode<synchronous>, transform_indices = @transform_5, window_bounds = array<i64: 1, 1>}]} {
    %0 = tpu.iota {dimensions = array<i32: 0>} : vector<65x8xi32>
    %c0 = arith.constant 0 : index
    %c0_0 = arith.constant 0 : index
    %1 = vector.load %arg2[%c0, %c0_0] : memref<1x8xi32, #tpu.memory_space<vmem>>, vector<1x8xi32>
    %2 = vector.broadcast %1 : vector<1x8xi32> to vector<65x8xi32>
    %3 = arith.cmpi eq, %0, %2 : vector<65x8xi32>
    %cst = arith.constant 1.000000e+00 : f32
    %cst_1 = arith.constant 0.000000e+00 : f32
    %4 = vector.broadcast %cst : f32 to vector<65x8xf32>
    %5 = vector.broadcast %cst_1 : f32 to vector<65x8xf32>
    %6 = arith.select %3, %4, %5 : vector<65x8xi1>, vector<65x8xf32>
    %c0_2 = arith.constant 0 : index
    %c0_3 = arith.constant 0 : index
    %7 = vector.load %arg3[%c0_2, %c0_3] : memref<8x8xi32, #tpu.memory_space<vmem>>, vector<8x8xi32>
    %cst_4 = arith.constant 0.000000e+00 : f32
    %8 = vector.broadcast %cst_4 : f32 to vector<65x8xf32>
    %9 = vector.extract_strided_slice %7 {offsets = [0, 0], sizes = [1, 8], strides = [1, 1]} : vector<8x8xi32> to vector<1x8xi32>
    %10 = vector.broadcast %9 : vector<1x8xi32> to vector<65x8xi32>
    %11 = arith.cmpi eq, %0, %10 : vector<65x8xi32>
    %cst_5 = arith.constant 1.000000e+00 : f32
    %cst_6 = arith.constant 0.000000e+00 : f32
    %12 = vector.broadcast %cst_5 : f32 to vector<65x8xf32>
    %13 = vector.broadcast %cst_6 : f32 to vector<65x8xf32>
    %14 = arith.select %11, %12, %13 : vector<65x8xi1>, vector<65x8xf32>
    %15 = arith.addf %8, %14 : vector<65x8xf32>
    %16 = vector.extract_strided_slice %7 {offsets = [1, 0], sizes = [1, 8], strides = [1, 1]} : vector<8x8xi32> to vector<1x8xi32>
    %17 = vector.broadcast %16 : vector<1x8xi32> to vector<65x8xi32>
    %18 = arith.cmpi eq, %0, %17 : vector<65x8xi32>
    %cst_7 = arith.constant 1.000000e+00 : f32
    %cst_8 = arith.constant 0.000000e+00 : f32
    %19 = vector.broadcast %cst_7 : f32 to vector<65x8xf32>
    %20 = vector.broadcast %cst_8 : f32 to vector<65x8xf32>
    %21 = arith.select %18, %19, %20 : vector<65x8xi1>, vector<65x8xf32>
    %22 = arith.addf %15, %21 : vector<65x8xf32>
    %23 = vector.extract_strided_slice %7 {offsets = [2, 0], sizes = [1, 8], strides = [1, 1]} : vector<8x8xi32> to vector<1x8xi32>
    %24 = vector.broadcast %23 : vector<1x8xi32> to vector<65x8xi32>
    %25 = arith.cmpi eq, %0, %24 : vector<65x8xi32>
    %cst_9 = arith.constant 1.000000e+00 : f32
    %cst_10 = arith.constant 0.000000e+00 : f32
    %26 = vector.broadcast %cst_9 : f32 to vector<65x8xf32>
    %27 = vector.broadcast %cst_10 : f32 to vector<65x8xf32>
    %28 = arith.select %25, %26, %27 : vector<65x8xi1>, vector<65x8xf32>
    %29 = arith.addf %22, %28 : vector<65x8xf32>
    %30 = vector.extract_strided_slice %7 {offsets = [3, 0], sizes = [1, 8], strides = [1, 1]} : vector<8x8xi32> to vector<1x8xi32>
    %31 = vector.broadcast %30 : vector<1x8xi32> to vector<65x8xi32>
    %32 = arith.cmpi eq, %0, %31 : vector<65x8xi32>
    %cst_11 = arith.constant 1.000000e+00 : f32
    %cst_12 = arith.constant 0.000000e+00 : f32
    %33 = vector.broadcast %cst_11 : f32 to vector<65x8xf32>
    %34 = vector.broadcast %cst_12 : f32 to vector<65x8xf32>
    %35 = arith.select %32, %33, %34 : vector<65x8xi1>, vector<65x8xf32>
    %36 = arith.addf %29, %35 : vector<65x8xf32>
    %37 = vector.extract_strided_slice %7 {offsets = [4, 0], sizes = [1, 8], strides = [1, 1]} : vector<8x8xi32> to vector<1x8xi32>
    %38 = vector.broadcast %37 : vector<1x8xi32> to vector<65x8xi32>
    %39 = arith.cmpi eq, %0, %38 : vector<65x8xi32>
    %cst_13 = arith.constant 1.000000e+00 : f32
    %cst_14 = arith.constant 0.000000e+00 : f32
    %40 = vector.broadcast %cst_13 : f32 to vector<65x8xf32>
    %41 = vector.broadcast %cst_14 : f32 to vector<65x8xf32>
    %42 = arith.select %39, %40, %41 : vector<65x8xi1>, vector<65x8xf32>
    %43 = arith.addf %36, %42 : vector<65x8xf32>
    %44 = vector.extract_strided_slice %7 {offsets = [5, 0], sizes = [1, 8], strides = [1, 1]} : vector<8x8xi32> to vector<1x8xi32>
    %45 = vector.broadcast %44 : vector<1x8xi32> to vector<65x8xi32>
    %46 = arith.cmpi eq, %0, %45 : vector<65x8xi32>
    %cst_15 = arith.constant 1.000000e+00 : f32
    %cst_16 = arith.constant 0.000000e+00 : f32
    %47 = vector.broadcast %cst_15 : f32 to vector<65x8xf32>
    %48 = vector.broadcast %cst_16 : f32 to vector<65x8xf32>
    %49 = arith.select %46, %47, %48 : vector<65x8xi1>, vector<65x8xf32>
    %50 = arith.addf %43, %49 : vector<65x8xf32>
    %51 = vector.extract_strided_slice %7 {offsets = [6, 0], sizes = [1, 8], strides = [1, 1]} : vector<8x8xi32> to vector<1x8xi32>
    %52 = vector.broadcast %51 : vector<1x8xi32> to vector<65x8xi32>
    %53 = arith.cmpi eq, %0, %52 : vector<65x8xi32>
    %cst_17 = arith.constant 1.000000e+00 : f32
    %cst_18 = arith.constant 0.000000e+00 : f32
    %54 = vector.broadcast %cst_17 : f32 to vector<65x8xf32>
    %55 = vector.broadcast %cst_18 : f32 to vector<65x8xf32>
    %56 = arith.select %53, %54, %55 : vector<65x8xi1>, vector<65x8xf32>
    %57 = arith.addf %50, %56 : vector<65x8xf32>
    %58 = vector.extract_strided_slice %7 {offsets = [7, 0], sizes = [1, 8], strides = [1, 1]} : vector<8x8xi32> to vector<1x8xi32>
    %59 = vector.broadcast %58 : vector<1x8xi32> to vector<65x8xi32>
    %60 = arith.cmpi eq, %0, %59 : vector<65x8xi32>
    %cst_19 = arith.constant 1.000000e+00 : f32
    %cst_20 = arith.constant 0.000000e+00 : f32
    %61 = vector.broadcast %cst_19 : f32 to vector<65x8xf32>
    %62 = vector.broadcast %cst_20 : f32 to vector<65x8xf32>
    %63 = arith.select %60, %61, %62 : vector<65x8xi1>, vector<65x8xf32>
    %64 = arith.addf %57, %63 : vector<65x8xf32>
    %c0_21 = arith.constant 0 : index
    %c0_22 = arith.constant 0 : index
    %65 = vector.load %arg1[%c0_21, %c0_22] : memref<32x65xf32, #tpu.memory_space<vmem>>, vector<32x65xf32>
    %cst_23 = arith.constant dense<0.000000e+00> : vector<32x8xf32>
    %66 = tpu.matmul %65, %6, %cst_23 {dimension_numbers = #tpu.dot_dimension_numbers<[1], [0], [0], [1], [0, 0, 1, 1], [], []>, precision = #tpu.contract_precision<fp32>} : vector<32x65xf32>, vector<65x8xf32>, vector<32x8xf32> -> vector<32x8xf32>
    %cst_24 = arith.constant dense<0.000000e+00> : vector<32x8xf32>
    %67 = tpu.matmul %65, %64, %cst_24 {dimension_numbers = #tpu.dot_dimension_numbers<[1], [0], [0], [1], [0, 0, 1, 1], [], []>, precision = #tpu.contract_precision<fp32>} : vector<32x65xf32>, vector<65x8xf32>, vector<32x8xf32> -> vector<32x8xf32>
    %68 = arith.mulf %66, %67 : vector<32x8xf32>
    %cst_25 = arith.constant dense<0.000000e+00> : vector<8xf32>
    %69 = vector.multi_reduction <add>, %68, %cst_25 [0] : vector<32x8xf32> to vector<8xf32>
    %70 = vector.shape_cast %69 : vector<8xf32> to vector<1x8xf32>
    %cst_26 = arith.constant 1.250000e-01 : f32
    %71 = vector.broadcast %cst_26 : f32 to vector<1x8xf32>
    %72 = arith.mulf %70, %71 : vector<1x8xf32>
    %73 = arith.negf %72 : vector<1x8xf32>
    %74 = math.exp %73 : vector<1x8xf32>
    %cst_27 = arith.constant 1.000000e+00 : f32
    %75 = vector.broadcast %cst_27 : f32 to vector<1x8xf32>
    %76 = arith.addf %75, %74 : vector<1x8xf32>
    %77 = arith.divf %75, %76 : vector<1x8xf32>
    %c0_28 = arith.constant 0 : index
    %c0_29 = arith.constant 0 : index
    %78 = vector.load %arg5[%c0_28, %c0_29] : memref<1x8xf32, #tpu.memory_space<vmem>>, vector<1x8xf32>
    tpu.vector_store %arg5[%c0_28, %c0_29], %77 {strides = array<i32>} : memref<1x8xf32, #tpu.memory_space<vmem>>, vector<1x8xf32>,
    %c0_30 = arith.constant 0 : index
    %c0_31 = arith.constant 0 : index
    %79 = vector.load %arg4[%c0_30, %c0_31] : memref<1x8xf32, #tpu.memory_space<vmem>>, vector<1x8xf32>
    %80 = math.log %77 : vector<1x8xf32>
    %cst_32 = arith.constant -1.000000e+02 : f32
    %81 = vector.broadcast %cst_32 : f32 to vector<1x8xf32>
    %82 = arith.maximumf %80, %81 : vector<1x8xf32>
    %cst_33 = arith.constant 1.000000e+00 : f32
    %83 = vector.broadcast %cst_33 : f32 to vector<1x8xf32>
    %84 = arith.subf %83, %77 : vector<1x8xf32>
    %85 = math.log %84 : vector<1x8xf32>
    %cst_34 = arith.constant -1.000000e+02 : f32
    %86 = vector.broadcast %cst_34 : f32 to vector<1x8xf32>
    %87 = arith.maximumf %85, %86 : vector<1x8xf32>
    %88 = arith.mulf %79, %82 : vector<1x8xf32>
    %cst_35 = arith.constant 1.000000e+00 : f32
    %89 = vector.broadcast %cst_35 : f32 to vector<1x8xf32>
    %90 = arith.subf %89, %79 : vector<1x8xf32>
    %91 = arith.mulf %90, %87 : vector<1x8xf32>
    %92 = arith.addf %88, %91 : vector<1x8xf32>
    %cst_36 = arith.constant 0.000000e+00 : f32
    %93 = vector.broadcast %cst_36 : f32 to vector<1x8xf32>
    %94 = arith.subf %93, %92 : vector<1x8xf32>
    %95 = vector.shape_cast %94 : vector<1x8xf32> to vector<1x1x8xf32>
    %cst_37 = arith.constant dense<0.000000e+00> : vector<1xf32>
    %96 = vector.multi_reduction <add>, %95, %cst_37 [1, 2] : vector<1x1x8xf32> to vector<1xf32>
    %97 = vector.shape_cast %96 : vector<1xf32> to vector<1x1x1xf32>
    %98 = vector.extract %97[0, 0, 0] : f32 from vector<1x1x1xf32>
    %99 = vector.broadcast %98 : f32 to vector<1x1xf32>
    %cst_38 = arith.constant 8.000000e+00 : f32
    %100 = vector.broadcast %cst_38 : f32 to vector<1x1xf32>
    %101 = arith.divf %99, %100 : vector<1x1xf32>
    %c0_39 = arith.constant 0 : index
    %c0_40 = arith.constant 0 : index
    %102 = vector.load %arg6[%c0_39, %c0_40] : memref<1x1xf32, #tpu.memory_space<vmem>>, vector<1x1xf32>
    tpu.vector_store %arg6[%c0_39, %c0_40], %101 {strides = array<i32>} : memref<1x1xf32, #tpu.memory_space<vmem>>, vector<1x1xf32>,
    return
  }
  func.func @transform_0(%arg0: i32) -> (i32, i32) {
    %c0_i32 = arith.constant 0 : i32
    %c0_i32_0 = arith.constant 0 : i32
    %c0_i32_1 = arith.constant 0 : i32
    return %c0_i32, %c0_i32_0 : i32, i32
  }
  func.func @transform_1(%arg0: i32) -> (i32, i32) {
    %c0_i32 = arith.constant 0 : i32
    %c0_i32_0 = arith.constant 0 : i32
    %c0_i32_1 = arith.constant 0 : i32
    return %c0_i32, %c0_i32_0 : i32, i32
  }
  func.func @transform_2(%arg0: i32) -> (i32, i32) {
    %c0_i32 = arith.constant 0 : i32
    %c0_i32_0 = arith.constant 0 : i32
    %c0_i32_1 = arith.constant 0 : i32
    return %c0_i32, %c0_i32_0 : i32, i32
  }
  func.func @transform_3(%arg0: i32) -> (i32, i32) {
    %c0_i32 = arith.constant 0 : i32
    %c0_i32_0 = arith.constant 0 : i32
    %c0_i32_1 = arith.constant 0 : i32
    return %c0_i32, %c0_i32_0 : i32, i32
  }
  func.func @transform_4(%arg0: i32) -> (i32, i32) {
    %c0_i32 = arith.constant 0 : i32
    %c0_i32_0 = arith.constant 0 : i32
    %c0_i32_1 = arith.constant 0 : i32
    return %c0_i32, %c0_i32_0 : i32, i32
  }
  func.func @transform_5(%arg0: i32) -> (i32, i32) {
    %c0_i32 = arith.constant 0 : i32
    %c0_i32_0 = arith.constant 0 : i32
    %c0_i32_1 = arith.constant 0 : i32
    return %c0_i32, %c0_i32_0 : i32, i32
  }
}

</mosaic_0001>

<llo_original>
// kernel: hop0_forward.1
$region0: #{hop0_forward.1}
  #allocation0 [shape = 'u32[]', space=smem, size = 0x4, offset = 0x4, fixed_abs, tag = 'smem constant byte address 0x4 - core index']
  #allocation1 [shape = 'u32[144,128]{1,0:T(1,128)}', space=vmem, size = 0x12000, scoped, tag = 'internal scratch']
  %s0 = inlined_call_operand.hbm [shape: f32[32,65], index: 0, kind: input, shape index: {}]
  %s1 = inlined_call_operand.vmem [shape: s32[1,8], index: 1, kind: input, shape index: {}]
  %s2 = inlined_call_operand.vmem [shape: s32[8,8], index: 2, kind: input, shape index: {}]
  %s3 = inlined_call_operand.vmem [shape: f32[1,8], index: 3, kind: input, shape index: {}]
  %s4 = inlined_call_operand.hbm [shape: f32[1,8], index: 4, kind: output, shape index: {0}]
  %s5 = inlined_call_operand.hbm [shape: f32[1,1], index: 5, kind: output, shape index: {1}]
  %6 = xla_tuple %s4, %s5
  %s7 = sld [smem:[#allocation0]]
  $region38: #{hop0_forward.1} parent=0
    _
  %s9 = ssub.s32 1, %s7
  %s10 = scalar_select 0, %s9, %s7
  $region1: #{hop0_forward.1} parent=0
    #allocation2 [shape = 'u8[16384]{0}', space=vmem, size = 0x4000, scoped, tag = 'input window, operand 0, single buffered']
    #allocation3 [shape = 's32[1]{0}', space=sflag, size = 0x4, scoped, tag = 'scoped memory for hop0_forward.1']
    #allocation4 [shape = 's32[1]{0}', space=sflag, size = 0x4, scoped, tag = 'scoped memory for hop0_forward.1']
    #allocation5 [shape = 'u8[512]{0}', space=vmem, size = 0x400, scoped, tag = 'output window, operand 0, single buffered']
    #allocation6 [shape = 'u8[512]{0}', space=vmem, size = 0x400, scoped, tag = 'output window, operand 1, single buffered']
    #allocation7 [shape = 's32[1]{0}', space=sflag, size = 0x4, scoped, tag = 'scoped memory for hop0_forward.1']
    %11 = vsyncpa [#allocation3], 0
    %12 = vsyncpa [#allocation4], 0
    %13 = vsyncpa [#allocation7], 0
    // Predicated region
    $region2: #{hop0_forward.1} parent=1 // pred_check
      _
    $region3: #{hop0_forward.1} parent=1 // pred_check_branch
      %15 = sbr.rel (0) target = $region5
    $region4: #{hop0_forward.1} parent=1 // pred_region
      %s17 = ssub.s32 512, 512
      %18 = vsyncadd [#allocation3], %s17
      %s19 = sshll.u32 [#allocation2], 4
      %s20 = int_to_ptr.vmem [resolvable:$true] %s19
      %25 = dma.hbm_to_vmem [thread:$0]  %s0, 512, %s20, [#allocation3], 128, 128, 8
    $region5: #{hop0_forward.1} parent=1 // pred_fallthru
      _
    // Predicated region
    $region6: #{hop0_forward.1} parent=1 // pred_check
      _
    $region7: #{hop0_forward.1} parent=1 // pred_check_branch
      %27 = sbr.rel (0) target = $region9
    $region8: #{hop0_forward.1} parent=1 // pred_region
      _
    $region9: #{hop0_forward.1} parent=1 // pred_fallthru
      _
    // Predicated region
    $region10: #{hop0_forward.1} parent=1 // pred_check
      _
    $region11: #{hop0_forward.1} parent=1 // pred_check_branch
      %29 = sbr.rel (0) target = $region13
    $region12: #{hop0_forward.1} parent=1 // pred_region
      _
    $region13: #{hop0_forward.1} parent=1 // pred_fallthru
      _
    // Predicated region
    $region14: #{hop0_forward.1} parent=1 // pred_check
      _
    $region15: #{hop0_forward.1} parent=1 // pred_check_branch
      %31 = sbr.rel (0) target = $region17
    $region16: #{hop0_forward.1} parent=1 // pred_region
      _
    $region17: #{hop0_forward.1} parent=1 // pred_fallthru
      _
    // Predicated region
    $region18: #{hop0_forward.1} parent=1 // pred_check
      _
    $region19: #{hop0_forward.1} parent=1 // pred_check_branch
      %33 = sbr.rel (0) target = $region21
    $region20: #{hop0_forward.1} parent=1 // pred_region
      %34 = dma.done [#allocation3], 512
    $region21: #{hop0_forward.1} parent=1 // pred_fallthru
      _
    %v35 = vlaneseq
    %v36 = vshrl.u32 %v35, 7
    %v37 = vadd.s32 %v36, 8
    %v38 = vadd.s32 %v36, 16
    %v39 = vadd.s32 %v36, 24
    %v40 = vadd.s32 %v36, 32
    %v41 = vadd.s32 %v36, 40
    %v42 = vadd.s32 %v36, 48
    %v43 = vadd.s32 %v36, 56
    %v44 = vadd.s32 %v36, 64
    %v45 = vld [vmem:[%s1] sm:$0x1]
    %v46 = vlaneseq
    %v47 = vshrl.u32 %v46, 7
    %v48 = vsub.s32 0, %v47
    %v49 = vrot.slane %v45, %v48
    %vm50 = vcmp.eq.s32.totalorder %v36, %v49
    %vm51 = vcmp.eq.s32.totalorder %v37, %v49
    %vm52 = vcmp.eq.s32.totalorder %v38, %v49
    %vm53 = vcmp.eq.s32.totalorder %v39, %v49
    %vm54 = vcmp.eq.s32.totalorder %v40, %v49
    %vm55 = vcmp.eq.s32.totalorder %v41, %v49
    %vm56 = vcmp.eq.s32.totalorder %v42, %v49
    %vm57 = vcmp.eq.s32.totalorder %v43, %v49
    %vm58 = vcmp.eq.s32.totalorder %v44, %v49
    %v59 = vsel %vm50, 1.0, 0.0
    %v60 = vsel %vm51, 1.0, 0.0
    %v61 = vsel %vm52, 1.0, 0.0
    %v62 = vsel %vm53, 1.0, 0.0
    %v63 = vsel %vm54, 1.0, 0.0
    %v64 = vsel %vm55, 1.0, 0.0
    %v65 = vsel %vm56, 1.0, 0.0
    %v66 = vsel %vm57, 1.0, 0.0
    %v67 = vsel %vm58, 1.0, 0.0
    %v68 = vld [vmem:[%s2] sm:$0xff]
    %v69 = vlaneseq
    %v70 = vshrl.u32 %v69, 7
    %v71 = vsub.s32 0, %v70
    %v72 = vrot.slane %v68, %v71
    %vm73 = vcmp.eq.s32.totalorder %v36, %v72
    %vm74 = vcmp.eq.s32.totalorder %v37, %v72
    %vm75 = vcmp.eq.s32.totalorder %v38, %v72
    %vm76 = vcmp.eq.s32.totalorder %v39, %v72
    %vm77 = vcmp.eq.s32.totalorder %v40, %v72
    %vm78 = vcmp.eq.s32.totalorder %v41, %v72
    %vm79 = vcmp.eq.s32.totalorder %v42, %v72
    %vm80 = vcmp.eq.s32.totalorder %v43, %v72
    %vm81 = vcmp.eq.s32.totalorder %v44, %v72
    %v82 = vsel %vm73, 1.0, 0.0
    %v83 = vsel %vm74, 1.0, 0.0
    %v84 = vsel %vm75, 1.0, 0.0
    %v85 = vsel %vm76, 1.0, 0.0
    %v86 = vsel %vm77, 1.0, 0.0
    %v87 = vsel %vm78, 1.0, 0.0
    %v88 = vsel %vm79, 1.0, 0.0
    %v89 = vsel %vm80, 1.0, 0.0
    %v90 = vsel %vm81, 1.0, 0.0
    %v91 = vadd.f32 %v82, 0.0
    %v92 = vadd.f32 %v83, 0.0
    %v93 = vadd.f32 %v84, 0.0
    %v94 = vadd.f32 %v85, 0.0
    %v95 = vadd.f32 %v86, 0.0
    %v96 = vadd.f32 %v87, 0.0
    %v97 = vadd.f32 %v88, 0.0
    %v98 = vadd.f32 %v89, 0.0
    %v99 = vadd.f32 %v90, 0.0
    %v100 = vlaneseq
    %v101 = vshrl.u32 %v100, 7
    %v102 = vsub.s32 1, %v101
    %v103 = vrot.slane %v68, %v102
    %vm104 = vcmp.eq.s32.totalorder %v36, %v103
    %vm105 = vcmp.eq.s32.totalorder %v37, %v103
    %vm106 = vcmp.eq.s32.totalorder %v38, %v103
    %vm107 = vcmp.eq.s32.totalorder %v39, %v103
    %vm108 = vcmp.eq.s32.totalorder %v40, %v103
    %vm109 = vcmp.eq.s32.totalorder %v41, %v103
    %vm110 = vcmp.eq.s32.totalorder %v42, %v103
    %vm111 = vcmp.eq.s32.totalorder %v43, %v103
    %vm112 = vcmp.eq.s32.totalorder %v44, %v103
    %v113 = vsel %vm104, 1.0, 0.0
    %v114 = vsel %vm105, 1.0, 0.0
    %v115 = vsel %vm106, 1.0, 0.0
    %v116 = vsel %vm107, 1.0, 0.0
    %v117 = vsel %vm108, 1.0, 0.0
    %v118 = vsel %vm109, 1.0, 0.0
    %v119 = vsel %vm110, 1.0, 0.0
    %v120 = vsel %vm111, 1.0, 0.0
    %v121 = vsel %vm112, 1.0, 0.0
    %v122 = vadd.f32 %v91, %v113
    %v123 = vadd.f32 %v92, %v114
    %v124 = vadd.f32 %v93, %v115
    %v125 = vadd.f32 %v94, %v116
    %v126 = vadd.f32 %v95, %v117
    %v127 = vadd.f32 %v96, %v118
    %v128 = vadd.f32 %v97, %v119
    %v129 = vadd.f32 %v98, %v120
    %v130 = vadd.f32 %v99, %v121
    %v131 = vlaneseq
    %v132 = vshrl.u32 %v131, 7
    %v133 = vsub.s32 2, %v132
    %v134 = vrot.slane %v68, %v133
    %vm135 = vcmp.eq.s32.totalorder %v36, %v134
    %vm136 = vcmp.eq.s32.totalorder %v37, %v134
    %vm137 = vcmp.eq.s32.totalorder %v38, %v134
    %vm138 = vcmp.eq.s32.totalorder %v39, %v134
    %vm139 = vcmp.eq.s32.totalorder %v40, %v134
    %vm140 = vcmp.eq.s32.totalorder %v41, %v134
    %vm141 = vcmp.eq.s32.totalorder %v42, %v134
    %vm142 = vcmp.eq.s32.totalorder %v43, %v134
    %vm143 = vcmp.eq.s32.totalorder %v44, %v134
    %v144 = vsel %vm135, 1.0, 0.0
    %v145 = vsel %vm136, 1.0, 0.0
    %v146 = vsel %vm137, 1.0, 0.0
    %v147 = vsel %vm138, 1.0, 0.0
    %v148 = vsel %vm139, 1.0, 0.0
    %v149 = vsel %vm140, 1.0, 0.0
    %v150 = vsel %vm141, 1.0, 0.0
    %v151 = vsel %vm142, 1.0, 0.0
    %v152 = vsel %vm143, 1.0, 0.0
    %v153 = vadd.f32 %v122, %v144
    %v154 = vadd.f32 %v123, %v145
    %v155 = vadd.f32 %v124, %v146
    %v156 = vadd.f32 %v125, %v147
    %v157 = vadd.f32 %v126, %v148
    %v158 = vadd.f32 %v127, %v149
    %v159 = vadd.f32 %v128, %v150
    %v160 = vadd.f32 %v129, %v151
    %v161 = vadd.f32 %v130, %v152
    %v162 = vlaneseq
    %v163 = vshrl.u32 %v162, 7
    %v164 = vsub.s32 3, %v163
    %v165 = vrot.slane %v68, %v164
    %vm166 = vcmp.eq.s32.totalorder %v36, %v165
    %vm167 = vcmp.eq.s32.totalorder %v37, %v165
    %vm168 = vcmp.eq.s32.totalorder %v38, %v165
    %vm169 = vcmp.eq.s32.totalorder %v39, %v165
    %vm170 = vcmp.eq.s32.totalorder %v40, %v165
    %vm171 = vcmp.eq.s32.totalorder %v41, %v165
    %vm172 = vcmp.eq.s32.totalorder %v42, %v165
    %vm173 = vcmp.eq.s32.totalorder %v43, %v165
    %vm174 = vcmp.eq.s32.totalorder %v44, %v165
    %v175 = vsel %vm166, 1.0, 0.0
    %v176 = vsel %vm167, 1.0, 0.0
    %v177 = vsel %vm168, 1.0, 0.0
    %v178 = vsel %vm169, 1.0, 0.0
    %v179 = vsel %vm170, 1.0, 0.0
    %v180 = vsel %vm171, 1.0, 0.0
    %v181 = vsel %vm172, 1.0, 0.0
    %v182 = vsel %vm173, 1.0, 0.0
    %v183 = vsel %vm174, 1.0, 0.0
    %v184 = vadd.f32 %v153, %v175
    %v185 = vadd.f32 %v154, %v176
    %v186 = vadd.f32 %v155, %v177
    %v187 = vadd.f32 %v156, %v178
    %v188 = vadd.f32 %v157, %v179
    %v189 = vadd.f32 %v158, %v180
    %v190 = vadd.f32 %v159, %v181
    %v191 = vadd.f32 %v160, %v182
    %v192 = vadd.f32 %v161, %v183
    %v193 = vlaneseq
    %v194 = vshrl.u32 %v193, 7
    %v195 = vsub.s32 4, %v194
    %v196 = vrot.slane %v68, %v195
    %vm197 = vcmp.eq.s32.totalorder %v36, %v196
    %vm198 = vcmp.eq.s32.totalorder %v37, %v196
    %vm199 = vcmp.eq.s32.totalorder %v38, %v196
    %vm200 = vcmp.eq.s32.totalorder %v39, %v196
    %vm201 = vcmp.eq.s32.totalorder %v40, %v196
    %vm202 = vcmp.eq.s32.totalorder %v41, %v196
    %vm203 = vcmp.eq.s32.totalorder %v42, %v196
    %vm204 = vcmp.eq.s32.totalorder %v43, %v196
    %vm205 = vcmp.eq.s32.totalorder %v44, %v196
    %v206 = vsel %vm197, 1.0, 0.0
    %v207 = vsel %vm198, 1.0, 0.0
    %v208 = vsel %vm199, 1.0, 0.0
    %v209 = vsel %vm200, 1.0, 0.0
    %v210 = vsel %vm201, 1.0, 0.0
    %v211 = vsel %vm202, 1.0, 0.0
    %v212 = vsel %vm203, 1.0, 0.0
    %v213 = vsel %vm204, 1.0, 0.0
    %v214 = vsel %vm205, 1.0, 0.0
    %v215 = vadd.f32 %v184, %v206
    %v216 = vadd.f32 %v185, %v207
    %v217 = vadd.f32 %v186, %v208
    %v218 = vadd.f32 %v187, %v209
    %v219 = vadd.f32 %v188, %v210
    %v220 = vadd.f32 %v189, %v211
    %v221 = vadd.f32 %v190, %v212
    %v222 = vadd.f32 %v191, %v213
    %v223 = vadd.f32 %v192, %v214
    %v224 = vlaneseq
    %v225 = vshrl.u32 %v224, 7
    %v226 = vsub.s32 5, %v225
    %v227 = vrot.slane %v68, %v226
    %vm228 = vcmp.eq.s32.totalorder %v36, %v227
    %vm229 = vcmp.eq.s32.totalorder %v37, %v227
    %vm230 = vcmp.eq.s32.totalorder %v38, %v227
    %vm231 = vcmp.eq.s32.totalorder %v39, %v227
    %vm232 = vcmp.eq.s32.totalorder %v40, %v227
    %vm233 = vcmp.eq.s32.totalorder %v41, %v227
    %vm234 = vcmp.eq.s32.totalorder %v42, %v227
    %vm235 = vcmp.eq.s32.totalorder %v43, %v227
    %vm236 = vcmp.eq.s32.totalorder %v44, %v227
    %v237 = vsel %vm228, 1.0, 0.0
    %v238 = vsel %vm229, 1.0, 0.0
    %v239 = vsel %vm230, 1.0, 0.0
    %v240 = vsel %vm231, 1.0, 0.0
    %v241 = vsel %vm232, 1.0, 0.0
    %v242 = vsel %vm233, 1.0, 0.0
    %v243 = vsel %vm234, 1.0, 0.0
    %v244 = vsel %vm235, 1.0, 0.0
    %v245 = vsel %vm236, 1.0, 0.0
    %v246 = vadd.f32 %v215, %v237
    %v247 = vadd.f32 %v216, %v238
    %v248 = vadd.f32 %v217, %v239
    %v249 = vadd.f32 %v218, %v240
    %v250 = vadd.f32 %v219, %v241
    %v251 = vadd.f32 %v220, %v242
    %v252 = vadd.f32 %v221, %v243
    %v253 = vadd.f32 %v222, %v244
    %v254 = vadd.f32 %v223, %v245
    %v255 = vlaneseq
    %v256 = vshrl.u32 %v255, 7
    %v257 = vsub.s32 6, %v256
    %v258 = vrot.slane %v68, %v257
    %vm259 = vcmp.eq.s32.totalorder %v36, %v258
    %vm260 = vcmp.eq.s32.totalorder %v37, %v258
    %vm261 = vcmp.eq.s32.totalorder %v38, %v258
    %vm262 = vcmp.eq.s32.totalorder %v39, %v258
    %vm263 = vcmp.eq.s32.totalorder %v40, %v258
    %vm264 = vcmp.eq.s32.totalorder %v41, %v258
    %vm265 = vcmp.eq.s32.totalorder %v42, %v258
    %vm266 = vcmp.eq.s32.totalorder %v43, %v258
    %vm267 = vcmp.eq.s32.totalorder %v44, %v258
    %v268 = vsel %vm259, 1.0, 0.0
    %v269 = vsel %vm260, 1.0, 0.0
    %v270 = vsel %vm261, 1.0, 0.0
    %v271 = vsel %vm262, 1.0, 0.0
    %v272 = vsel %vm263, 1.0, 0.0
    %v273 = vsel %vm264, 1.0, 0.0
    %v274 = vsel %vm265, 1.0, 0.0
    %v275 = vsel %vm266, 1.0, 0.0
    %v276 = vsel %vm267, 1.0, 0.0
    %v277 = vadd.f32 %v246, %v268
    %v278 = vadd.f32 %v247, %v269
    %v279 = vadd.f32 %v248, %v270
    %v280 = vadd.f32 %v249, %v271
    %v281 = vadd.f32 %v250, %v272
    %v282 = vadd.f32 %v251, %v273
    %v283 = vadd.f32 %v252, %v274
    %v284 = vadd.f32 %v253, %v275
    %v285 = vadd.f32 %v254, %v276
    %v286 = vlaneseq
    %v287 = vshrl.u32 %v286, 7
    %v288 = vsub.s32 7, %v287
    %v289 = vrot.slane %v68, %v288
    %vm290 = vcmp.eq.s32.totalorder %v36, %v289
    %vm291 = vcmp.eq.s32.totalorder %v37, %v289
    %vm292 = vcmp.eq.s32.totalorder %v38, %v289
    %vm293 = vcmp.eq.s32.totalorder %v39, %v289
    %vm294 = vcmp.eq.s32.totalorder %v40, %v289
    %vm295 = vcmp.eq.s32.totalorder %v41, %v289
    %vm296 = vcmp.eq.s32.totalorder %v42, %v289
    %vm297 = vcmp.eq.s32.totalorder %v43, %v289
    %vm298 = vcmp.eq.s32.totalorder %v44, %v289
    %v299 = vsel %vm290, 1.0, 0.0
    %v300 = vsel %vm291, 1.0, 0.0
    %v301 = vsel %vm292, 1.0, 0.0
    %v302 = vsel %vm293, 1.0, 0.0
    %v303 = vsel %vm294, 1.0, 0.0
    %v304 = vsel %vm295, 1.0, 0.0
    %v305 = vsel %vm296, 1.0, 0.0
    %v306 = vsel %vm297, 1.0, 0.0
    %v307 = vsel %vm298, 1.0, 0.0
    %v308 = vadd.f32 %v277, %v299
    %v309 = vadd.f32 %v278, %v300
    %v310 = vadd.f32 %v279, %v301
    %v311 = vadd.f32 %v280, %v302
    %v312 = vadd.f32 %v281, %v303
    %v313 = vadd.f32 %v282, %v304
    %v314 = vadd.f32 %v283, %v305
    %v315 = vadd.f32 %v284, %v306
    %v316 = vadd.f32 %v285, %v307
    %v317 = vld [vmem:[#allocation2] sm:$0xff]
    %v318 = vld [vmem:[#allocation2 + $0x8] sm:$0xff]
    %v319 = vld [vmem:[#allocation2 + $0x10] sm:$0xff]
    %v320 = vld [vmem:[#allocation2 + $0x18] sm:$0xff]
    %vm321 = vcmask 531456
    %v323 = vsel %vm321, %v317, 0
    %v326 = vsel %vm321, %v318, 0
    %v329 = vsel %vm321, %v319, 0
    %v332 = vsel %vm321, %v320, 0
    %vm334 = vcmask 1040384
    %v336 = vsel %vm334, %v67, 0
    %338 = vmatprep.subr.mxu0 0.0
    %339 = vmatpush1.msra.mxu0 %v59
    %340 = vmatprep.subr.mxu0 0.0
    %341 = vmatpush1.msra.mxu0 %v60
    %342 = vmatprep.subr.mxu0 0.0
    %343 = vmatpush1.msra.mxu0 %v61
    %344 = vmatprep.subr.mxu0 0.0
    %345 = vmatpush1.msra.mxu0 %v62
    %346 = vmatprep.subr.mxu0 0.0
    %347 = vmatpush1.msra.mxu0 %v63
    %348 = vmatprep.subr.mxu0 0.0
    %349 = vmatpush1.msra.mxu0 %v64
    %350 = vmatprep.subr.mxu0 0.0
    %351 = vmatpush1.msra.mxu0 %v65
    %352 = vmatprep.subr.mxu0 0.0
    %353 = vmatpush1.msra.mxu0 %v66
    %354 = vmatprep.subr.mxu0 0.0
    %v355 = vand.u32 %v336, 4294901760
    %356 = vmatpush1.msra.mxu0 %v355
    %357 = vmatprep.subr.mxu0 0.0
    %358 = vmatpush1.msra.mxu0 0.0
    %359 = vmatprep.subr.mxu0 0.0
    %360 = vmatpush1.msra.mxu0 0.0
    %361 = vmatprep.subr.mxu0 0.0
    %362 = vmatpush1.msra.mxu0 0.0
    %363 = vmatprep.subr.mxu0 0.0
    %364 = vmatpush1.msra.mxu0 0.0
    %365 = vmatprep.subr.mxu0 0.0
    %366 = vmatpush1.msra.mxu0 0.0
    %367 = vmatprep.subr.mxu0 0.0
    %368 = vmatpush1.msra.mxu0 0.0
    %369 = vmatprep.subr.mxu0 0.0
    %370 = vmatpush1.msra.mxu0 0.0
    %371 = vmatprep.subr.mxu0 0.0
    %372 = vmatpush1.msra.mxu0 0.0
    %373 = vmatprep.subr.mxu0 0.0
    %374 = vmatpush1.msra.mxu0 0.0
    %375 = vmatprep.subr.mxu0 0.0
    %376 = vmatpush1.msra.mxu0 0.0
    %377 = vmatprep.subr.mxu0 0.0
    %378 = vmatpush1.msra.mxu0 0.0
    %379 = vmatprep.subr.mxu0 0.0
    %380 = vmatpush1.msra.mxu0 0.0
    %381 = vmatprep.subr.mxu0 0.0
    %382 = vmatpush1.msra.mxu0 0.0
    %383 = vmatprep.subr.mxu0 0.0
    %384 = vmatpush1.msra.mxu0 0.0
    %385 = vmatprep.subr.mxu0 0.0
    %386 = vmatpush1.msra.mxu0 0.0
    %387 = vmatprep.subr.mxu0 0.0
    %388 = vmatpush1.msra.mxu0 0.0
    %389 = vmatprep.subr.mxu0 0.0
    %390 = vmatpush1.msra.mxu0 0.0
    %391 = vmatprep.subr.mxu0 0.0
    %392 = vmatpush1.msra.mxu0 0.0
    %393 = vmatprep.subr.mxu0 0.0
    %394 = vmatpush1.msra.mxu0 0.0
    %395 = vmatprep.subr.mxu0 0.0
    %396 = vmatpush1.msra.mxu0 0.0
    %397 = vmatprep.subr.mxu0 0.0
    %398 = vmatpush1.msra.mxu0 0.0
    %399 = vmatprep.subr.mxu0 0.0
    %400 = vmatpush1.msra.mxu0 0.0
    %401 = vmatprep.subr.mxu0 0.0
    %402 = vmatpush1.msra.mxu0 0.0
    %403 = vmatprep.mubr.f32.mxu0 0.0
    %v404 = vand.u32 %v323, 4294901760
    %v405 = vsub.f32 %v323, %v404
    %v406 = vand.u32 %v405, 4294901760
    %v407 = vsub.f32 %v405, %v406
    %v408 = vand.u32 %v407, 4294901760
    %409 = vmatmul.mubr.f32.gmra.mrb[0].mxu0 %v408
    %v410 = vpop.f32.mrb[0].mxu0
    %v411 = vadd.f32 0.0, %v410
    %v412 = vpop.f32.mrb[0].mxu0
    %413 = vmatprep.mubr.f32.mxu0 0.0
    %v414 = vand.u32 %v326, 4294901760
    %v415 = vsub.f32 %v326, %v414
    %v416 = vand.u32 %v415, 4294901760
    %v417 = vsub.f32 %v415, %v416
    %v418 = vand.u32 %v417, 4294901760
    %419 = vmatmul.mubr.f32.gmra.mrb[0].mxu0 %v418
    %v420 = vpop.f32.mrb[0].mxu0
    %v421 = vadd.f32 0.0, %v420
    %v422 = vpop.f32.mrb[0].mxu0
    %423 = vmatprep.mubr.f32.mxu0 0.0
    %v424 = vand.u32 %v329, 4294901760
    %v425 = vsub.f32 %v329, %v424
    %v426 = vand.u32 %v425, 4294901760
    %v427 = vsub.f32 %v425, %v426
    %v428 = vand.u32 %v427, 4294901760
    %429 = vmatmul.mubr.f32.gmra.mrb[0].mxu0 %v428
    %v430 = vpop.f32.mrb[0].mxu0
    %v431 = vadd.f32 0.0, %v430
    %v432 = vpop.f32.mrb[0].mxu0
    %433 = vmatprep.mubr.f32.mxu0 0.0
    %v434 = vand.u32 %v332, 4294901760
    %v435 = vsub.f32 %v332, %v434
    %v436 = vand.u32 %v435, 4294901760
    %v437 = vsub.f32 %v435, %v436
    %v438 = vand.u32 %v437, 4294901760
    %439 = vmatmul.mubr.f32.gmra.mrb[0].mxu0 %v438
    %v440 = vpop.f32.mrb[0].mxu0
    %v441 = vadd.f32 0.0, %v440
    %v442 = vpop.f32.mrb[0].mxu0
    %443 = vdwg.mxu0
    %444 = vmatprep.subr.mxu0 0.0
    %v445 = vsub.f32 %v59, %v59
    %v446 = vand.u32 %v445, 4294901760
    %v447 = vsub.f32 %v445, %v446
    %v448 = vand.u32 %v447, 4294901760
    %449 = vmatpush1.msra.mxu0 %v448
    %450 = vmatprep.subr.mxu0 0.0
    %v451 = vsub.f32 %v60, %v60
    %v452 = vand.u32 %v451, 4294901760
    %v453 = vsub.f32 %v451, %v452
    %v454 = vand.u32 %v453, 4294901760
    %455 = vmatpush1.msra.mxu0 %v454
    %456 = vmatprep.subr.mxu0 0.0
    %v457 = vsub.f32 %v61, %v61
    %v458 = vand.u32 %v457, 4294901760
    %v459 = vsub.f32 %v457, %v458
    %v460 = vand.u32 %v459, 4294901760
    %461 = vmatpush1.msra.mxu0 %v460
    %462 = vmatprep.subr.mxu0 0.0
    %v463 = vsub.f32 %v62, %v62
    %v464 = vand.u32 %v463, 4294901760
    %v465 = vsub.f32 %v463, %v464
    %v466 = vand.u32 %v465, 4294901760
    %467 = vmatpush1.msra.mxu0 %v466
    %468 = vmatprep.subr.mxu0 0.0
    %v469 = vsub.f32 %v63, %v63
    %v470 = vand.u32 %v469, 4294901760
    %v471 = vsub.f32 %v469, %v470
    %v472 = vand.u32 %v471, 4294901760
    %473 = vmatpush1.msra.mxu0 %v472
    %474 = vmatprep.subr.mxu0 0.0
    %v475 = vsub.f32 %v64, %v64
    %v476 = vand.u32 %v475, 4294901760
    %v477 = vsub.f32 %v475, %v476
    %v478 = vand.u32 %v477, 4294901760
    %479 = vmatpush1.msra.mxu0 %v478
    %480 = vmatprep.subr.mxu0 0.0
    %v481 = vsub.f32 %v65, %v65
    %v482 = vand.u32 %v481, 4294901760
    %v483 = vsub.f32 %v481, %v482
    %v484 = vand.u32 %v483, 4294901760
    %485 = vmatpush1.msra.mxu0 %v484
    %486 = vmatprep.subr.mxu0 0.0
    %v487 = vsub.f32 %v66, %v66
    %v488 = vand.u32 %v487, 4294901760
    %v489 = vsub.f32 %v487, %v488
    %v490 = vand.u32 %v489, 4294901760
    %491 = vmatpush1.msra.mxu0 %v490
    %492 = vmatprep.subr.mxu0 0.0
    %v493 = vand.u32 %v336, 4294901760
    %v494 = vsub.f32 %v336, %v493
    %v495 = vand.u32 %v494, 4294901760
    %v496 = vsub.f32 %v494, %v495
    %v497 = vand.u32 %v496, 4294901760
    %498 = vmatpush1.msra.mxu0 %v497
    %499 = vmatprep.subr.mxu0 0.0
    %500 = vmatpush1.msra.mxu0 0.0
    %501 = vmatprep.subr.mxu0 0.0
    %502 = vmatpush1.msra.mxu0 0.0
    %503 = vmatprep.subr.mxu0 0.0
    %504 = vmatpush1.msra.mxu0 0.0
    %505 = vmatprep.subr.mxu0 0.0
    %506 = vmatpush1.msra.mxu0 0.0
    %507 = vmatprep.subr.mxu0 0.0
    %508 = vmatpush1.msra.mxu0 0.0
    %509 = vmatprep.subr.mxu0 0.0
    %510 = vmatpush1.msra.mxu0 0.0
    %511 = vmatprep.subr.mxu0 0.0
    %512 = vmatpush1.msra.mxu0 0.0
    %513 = vmatprep.subr.mxu0 0.0
    %514 = vmatpush1.msra.mxu0 0.0
    %515 = vmatprep.subr.mxu0 0.0
    %516 = vmatpush1.msra.mxu0 0.0
    %517 = vmatprep.subr.mxu0 0.0
    %518 = vmatpush1.msra.mxu0 0.0
    %519 = vmatprep.subr.mxu0 0.0
    %520 = vmatpush1.msra.mxu0 0.0
    %521 = vmatprep.subr.mxu0 0.0
    %522 = vmatpush1.msra.mxu0 0.0
    %523 = vmatprep.subr.mxu0 0.0
    %524 = vmatpush1.msra.mxu0 0.0
    %525 = vmatprep.subr.mxu0 0.0
    %526 = vmatpush1.msra.mxu0 0.0
    %527 = vmatprep.subr.mxu0 0.0
    %528 = vmatpush1.msra.mxu0 0.0
    %529 = vmatprep.subr.mxu0 0.0
    %530 = vmatpush1.msra.mxu0 0.0
    %531 = vmatprep.subr.mxu0 0.0
    %532 = vmatpush1.msra.mxu0 0.0
    %533 = vmatprep.subr.mxu0 0.0
    %534 = vmatpush1.msra.mxu0 0.0
    %535 = vmatprep.subr.mxu0 0.0
    %536 = vmatpush1.msra.mxu0 0.0
    %537 = vmatprep.subr.mxu0 0.0
    %538 = vmatpush1.msra.mxu0 0.0
    %539 = vmatprep.subr.mxu0 0.0
    %540 = vmatpush1.msra.mxu0 0.0
    %541 = vmatprep.subr.mxu0 0.0
    %542 = vmatpush1.msra.mxu0 0.0
    %543 = vmatprep.subr.mxu0 0.0
    %544 = vmatpush1.msra.mxu0 0.0
    %545 = vmatprep.mubr.f32.mxu0 0.0
    %v546 = vand.u32 %v323, 4294901760
    %547 = vmatmul.mubr.f32.gmra.mrb[0].mxu0 %v546
    %v548 = vpop.f32.mrb[0].mxu0
    %v549 = vadd.f32 %v411, %v548
    %v550 = vpop.f32.mrb[0].mxu0
    %551 = vmatprep.mubr.f32.mxu0 0.0
    %v552 = vand.u32 %v326, 4294901760
    %553 = vmatmul.mubr.f32.gmra.mrb[0].mxu0 %v552
    %v554 = vpop.f32.mrb[0].mxu0
    %v555 = vadd.f32 %v421, %v554
    %v556 = vpop.f32.mrb[0].mxu0
    %557 = vmatprep.mubr.f32.mxu0 0.0
    %v558 = vand.u32 %v329, 4294901760
    %559 = vmatmul.mubr.f32.gmra.mrb[0].mxu0 %v558
    %v560 = vpop.f32.mrb[0].mxu0
    %v561 = vadd.f32 %v431, %v560
    %v562 = vpop.f32.mrb[0].mxu0
    %563 = vmatprep.mubr.f32.mxu0 0.0
    %v564 = vand.u32 %v332, 4294901760
    %565 = vmatmul.mubr.f32.gmra.mrb[0].mxu0 %v564
    %v566 = vpop.f32.mrb[0].mxu0
    %v567 = vadd.f32 %v441, %v566
    %v568 = vpop.f32.mrb[0].mxu0
    %569 = vdwg.mxu0
    %570 = vmatprep.subr.mxu0 0.0
    %v571 = vsub.f32 %v59, %v59
    %572 = vmatpush1.msra.mxu0 %v571
    %573 = vmatprep.subr.mxu0 0.0
    %v574 = vsub.f32 %v60, %v60
    %575 = vmatpush1.msra.mxu0 %v574
    %576 = vmatprep.subr.mxu0 0.0
    %v577 = vsub.f32 %v61, %v61
    %578 = vmatpush1.msra.mxu0 %v577
    %579 = vmatprep.subr.mxu0 0.0
    %v580 = vsub.f32 %v62, %v62
    %581 = vmatpush1.msra.mxu0 %v580
    %582 = vmatprep.subr.mxu0 0.0
    %v583 = vsub.f32 %v63, %v63
    %584 = vmatpush1.msra.mxu0 %v583
    %585 = vmatprep.subr.mxu0 0.0
    %v586 = vsub.f32 %v64, %v64
    %587 = vmatpush1.msra.mxu0 %v586
    %588 = vmatprep.subr.mxu0 0.0
    %v589 = vsub.f32 %v65, %v65
    %590 = vmatpush1.msra.mxu0 %v589
    %591 = vmatprep.subr.mxu0 0.0
    %v592 = vsub.f32 %v66, %v66
    %593 = vmatpush1.msra.mxu0 %v592
    %594 = vmatprep.subr.mxu0 0.0
    %v595 = vand.u32 %v336, 4294901760
    %v596 = vsub.f32 %v336, %v595
    %597 = vmatpush1.msra.mxu0 %v596
    %598 = vmatprep.subr.mxu0 0.0
    %599 = vmatpush1.msra.mxu0 0.0
    %600 = vmatprep.subr.mxu0 0.0
    %601 = vmatpush1.msra.mxu0 0.0
    %602 = vmatprep.subr.mxu0 0.0
    %603 = vmatpush1.msra.mxu0 0.0
    %604 = vmatprep.subr.mxu0 0.0
    %605 = vmatpush1.msra.mxu0 0.0
    %606 = vmatprep.subr.mxu0 0.0
    %607 = vmatpush1.msra.mxu0 0.0
    %608 = vmatprep.subr.mxu0 0.0
    %609 = vmatpush1.msra.mxu0 0.0
    %610 = vmatprep.subr.mxu0 0.0
    %611 = vmatpush1.msra.mxu0 0.0
    %612 = vmatprep.subr.mxu0 0.0
    %613 = vmatpush1.msra.mxu0 0.0
    %614 = vmatprep.subr.mxu0 0.0
    %615 = vmatpush1.msra.mxu0 0.0
    %616 = vmatprep.subr.mxu0 0.0
    %617 = vmatpush1.msra.mxu0 0.0
    %618 = vmatprep.subr.mxu0 0.0
    %619 = vmatpush1.msra.mxu0 0.0
    %620 = vmatprep.subr.mxu0 0.0
    %621 = vmatpush1.msra.mxu0 0.0
    %622 = vmatprep.subr.mxu0 0.0
    %623 = vmatpush1.msra.mxu0 0.0
    %624 = vmatprep.subr.mxu0 0.0
    %625 = vmatpush1.msra.mxu0 0.0
    %626 = vmatprep.subr.mxu0 0.0
    %627 = vmatpush1.msra.mxu0 0.0
    %628 = vmatprep.subr.mxu0 0.0
    %629 = vmatpush1.msra.mxu0 0.0
    %630 = vmatprep.subr.mxu0 0.0
    %631 = vmatpush1.msra.mxu0 0.0
    %632 = vmatprep.subr.mxu0 0.0
    %633 = vmatpush1.msra.mxu0 0.0
    %634 = vmatprep.subr.mxu0 0.0
    %635 = vmatpush1.msra.mxu0 0.0
    %636 = vmatprep.subr.mxu0 0.0
    %637 = vmatpush1.msra.mxu0 0.0
    %638 = vmatprep.subr.mxu0 0.0
    %639 = vmatpush1.msra.mxu0 0.0
    %640 = vmatprep.subr.mxu0 0.0
    %641 = vmatpush1.msra.mxu0 0.0
    %642 = vmatprep.subr.mxu0 0.0
    %643 = vmatpush1.msra.mxu0 0.0
    %644 = vmatprep.mubr.f32.mxu0 0.0
    %v645 = vand.u32 %v323, 4294901760
    %v646 = vsub.f32 %v323, %v645
    %647 = vmatmul.mubr.f32.gmra.mrb[0].mxu0 %v646
    %v648 = vpop.f32.mrb[0].mxu0
    %v649 = vadd.f32 %v549, %v648
    %v650 = vpop.f32.mrb[0].mxu0
    %651 = vmatprep.mubr.f32.mxu0 0.0
    %v652 = vand.u32 %v326, 4294901760
    %v653 = vsub.f32 %v326, %v652
    %654 = vmatmul.mubr.f32.gmra.mrb[0].mxu0 %v653
    %v655 = vpop.f32.mrb[0].mxu0
    %v656 = vadd.f32 %v555, %v655
    %v657 = vpop.f32.mrb[0].mxu0
    %658 = vmatprep.mubr.f32.mxu0 0.0
    %v659 = vand.u32 %v329, 4294901760
    %v660 = vsub.f32 %v329, %v659
    %661 = vmatmul.mubr.f32.gmra.mrb[0].mxu0 %v660
    %v662 = vpop.f32.mrb[0].mxu0
    %v663 = vadd.f32 %v561, %v662
    %v664 = vpop.f32.mrb[0].mxu0
    %665 = vmatprep.mubr.f32.mxu0 0.0
    %v666 = vand.u32 %v332, 4294901760
    %v667 = vsub.f32 %v332, %v666
    %668 = vmatmul.mubr.f32.gmra.mrb[0].mxu0 %v667
    %v669 = vpop.f32.mrb[0].mxu0
    %v670 = vadd.f32 %v567, %v669
    %v671 = vpop.f32.mrb[0].mxu0
    %672 = vdwg.mxu0
    %673 = vmatprep.subr.mxu0 0.0
    %674 = vmatpush1.msra.mxu0 %v59
    %675 = vmatprep.subr.mxu0 0.0
    %676 = vmatpush1.msra.mxu0 %v60
    %677 = vmatprep.subr.mxu0 0.0
    %678 = vmatpush1.msra.mxu0 %v61
    %679 = vmatprep.subr.mxu0 0.0
    %680 = vmatpush1.msra.mxu0 %v62
    %681 = vmatprep.subr.mxu0 0.0
    %682 = vmatpush1.msra.mxu0 %v63
    %683 = vmatprep.subr.mxu0 0.0
    %684 = vmatpush1.msra.mxu0 %v64
    %685 = vmatprep.subr.mxu0 0.0
    %686 = vmatpush1.msra.mxu0 %v65
    %687 = vmatprep.subr.mxu0 0.0
    %688 = vmatpush1.msra.mxu0 %v66
    %689 = vmatprep.subr.mxu0 0.0
    %v690 = vand.u32 %v336, 4294901760
    %691 = vmatpush1.msra.mxu0 %v690
    %692 = vmatprep.subr.mxu0 0.0
    %693 = vmatpush1.msra.mxu0 0.0
    %694 = vmatprep.subr.mxu0 0.0
    %695 = vmatpush1.msra.mxu0 0.0
    %696 = vmatprep.subr.mxu0 0.0
    %697 = vmatpush1.msra.mxu0 0.0
    %698 = vmatprep.subr.mxu0 0.0
    %699 = vmatpush1.msra.mxu0 0.0
    %700 = vmatprep.subr.mxu0 0.0
    %701 = vmatpush1.msra.mxu0 0.0
    %702 = vmatprep.subr.mxu0 0.0
    %703 = vmatpush1.msra.mxu0 0.0
    %704 = vmatprep.subr.mxu0 0.0
    %705 = vmatpush1.msra.mxu0 0.0
    %706 = vmatprep.subr.mxu0 0.0
    %707 = vmatpush1.msra.mxu0 0.0
    %708 = vmatprep.subr.mxu0 0.0
    %709 = vmatpush1.msra.mxu0 0.0
    %710 = vmatprep.subr.mxu0 0.0
    %711 = vmatpush1.msra.mxu0 0.0
    %712 = vmatprep.subr.mxu0 0.0
    %713 = vmatpush1.msra.mxu0 0.0
    %714 = vmatprep.subr.mxu0 0.0
    %715 = vmatpush1.msra.mxu0 0.0
    %716 = vmatprep.subr.mxu0 0.0
    %717 = vmatpush1.msra.mxu0 0.0
    %718 = vmatprep.subr.mxu0 0.0
    %719 = vmatpush1.msra.mxu0 0.0
    %720 = vmatprep.subr.mxu0 0.0
    %721 = vmatpush1.msra.mxu0 0.0
    %722 = vmatprep.subr.mxu0 0.0
    %723 = vmatpush1.msra.mxu0 0.0
    %724 = vmatprep.subr.mxu0 0.0
    %725 = vmatpush1.msra.mxu0 0.0
    %726 = vmatprep.subr.mxu0 0.0
    %727 = vmatpush1.msra.mxu0 0.0
    %728 = vmatprep.subr.mxu0 0.0
    %729 = vmatpush1.msra.mxu0 0.0
    %730 = vmatprep.subr.mxu0 0.0
    %731 = vmatpush1.msra.mxu0 0.0
    %732 = vmatprep.subr.mxu0 0.0
    %733 = vmatpush1.msra.mxu0 0.0
    %734 = vmatprep.subr.mxu0 0.0
    %735 = vmatpush1.msra.mxu0 0.0
    %736 = vmatprep.subr.mxu0 0.0
    %737 = vmatpush1.msra.mxu0 0.0
    %738 = vmatprep.mubr.f32.mxu0 0.0
    %v739 = vand.u32 %v323, 4294901760
    %v740 = vsub.f32 %v323, %v739
    %v741 = vand.u32 %v740, 4294901760
    %742 = vmatmul.mubr.f32.gmra.mrb[0].mxu0 %v741
    %v743 = vpop.f32.mrb[0].mxu0
    %v744 = vadd.f32 %v649, %v743
    %v745 = vpop.f32.mrb[0].mxu0
    %746 = vmatprep.mubr.f32.mxu0 0.0
    %v747 = vand.u32 %v326, 4294901760
    %v748 = vsub.f32 %v326, %v747
    %v749 = vand.u32 %v748, 4294901760
    %750 = vmatmul.mubr.f32.gmra.mrb[0].mxu0 %v749
    %v751 = vpop.f32.mrb[0].mxu0
    %v752 = vadd.f32 %v656, %v751
    %v753 = vpop.f32.mrb[0].mxu0
    %754 = vmatprep.mubr.f32.mxu0 0.0
    %v755 = vand.u32 %v329, 4294901760
    %v756 = vsub.f32 %v329, %v755
    %v757 = vand.u32 %v756, 4294901760
    %758 = vmatmul.mubr.f32.gmra.mrb[0].mxu0 %v757
    %v759 = vpop.f32.mrb[0].mxu0
    %v760 = vadd.f32 %v663, %v759
    %v761 = vpop.f32.mrb[0].mxu0
    %762 = vmatprep.mubr.f32.mxu0 0.0
    %v763 = vand.u32 %v332, 4294901760
    %v764 = vsub.f32 %v332, %v763
    %v765 = vand.u32 %v764, 4294901760
    %766 = vmatmul.mubr.f32.gmra.mrb[0].mxu0 %v765
    %v767 = vpop.f32.mrb[0].mxu0
    %v768 = vadd.f32 %v670, %v767
    %v769 = vpop.f32.mrb[0].mxu0
    %770 = vdwg.mxu0
    %771 = vmatprep.subr.mxu0 0.0
    %v772 = vsub.f32 %v59, %v59
    %v773 = vand.u32 %v772, 4294901760
    %774 = vmatpush1.msra.mxu0 %v773
    %775 = vmatprep.subr.mxu0 0.0
    %v776 = vsub.f32 %v60, %v60
    %v777 = vand.u32 %v776, 4294901760
    %778 = vmatpush1.msra.mxu0 %v777
    %779 = vmatprep.subr.mxu0 0.0
    %v780 = vsub.f32 %v61, %v61
    %v781 = vand.u32 %v780, 4294901760
    %782 = vmatpush1.msra.mxu0 %v781
    %783 = vmatprep.subr.mxu0 0.0
    %v784 = vsub.f32 %v62, %v62
    %v785 = vand.u32 %v784, 4294901760
    %786 = vmatpush1.msra.mxu0 %v785
    %787 = vmatprep.subr.mxu0 0.0
    %v788 = vsub.f32 %v63, %v63
    %v789 = vand.u32 %v788, 4294901760
    %790 = vmatpush1.msra.mxu0 %v789
    %791 = vmatprep.subr.mxu0 0.0
    %v792 = vsub.f32 %v64, %v64
    %v793 = vand.u32 %v792, 4294901760
    %794 = vmatpush1.msra.mxu0 %v793
    %795 = vmatprep.subr.mxu0 0.0
    %v796 = vsub.f32 %v65, %v65
    %v797 = vand.u32 %v796, 4294901760
    %798 = vmatpush1.msra.mxu0 %v797
    %799 = vmatprep.subr.mxu0 0.0
    %v800 = vsub.f32 %v66, %v66
    %v801 = vand.u32 %v800, 4294901760
    %802 = vmatpush1.msra.mxu0 %v801
    %803 = vmatprep.subr.mxu0 0.0
    %v804 = vand.u32 %v336, 4294901760
    %v805 = vsub.f32 %v336, %v804
    %v806 = vand.u32 %v805, 4294901760
    %807 = vmatpush1.msra.mxu0 %v806
    %808 = vmatprep.subr.mxu0 0.0
    %809 = vmatpush1.msra.mxu0 0.0
    %810 = vmatprep.subr.mxu0 0.0
    %811 = vmatpush1.msra.mxu0 0.0
    %812 = vmatprep.subr.mxu0 0.0
    %813 = vmatpush1.msra.mxu0 0.0
    %814 = vmatprep.subr.mxu0 0.0
    %815 = vmatpush1.msra.mxu0 0.0
    %816 = vmatprep.subr.mxu0 0.0
    %817 = vmatpush1.msra.mxu0 0.0
    %818 = vmatprep.subr.mxu0 0.0
    %819 = vmatpush1.msra.mxu0 0.0
    %820 = vmatprep.subr.mxu0 0.0
    %821 = vmatpush1.msra.mxu0 0.0
    %822 = vmatprep.subr.mxu0 0.0
    %823 = vmatpush1.msra.mxu0 0.0
    %824 = vmatprep.subr.mxu0 0.0
    %825 = vmatpush1.msra.mxu0 0.0
    %826 = vmatprep.subr.mxu0 0.0
    %827 = vmatpush1.msra.mxu0 0.0
    %828 = vmatprep.subr.mxu0 0.0
    %829 = vmatpush1.msra.mxu0 0.0
    %830 = vmatprep.subr.mxu0 0.0
    %831 = vmatpush1.msra.mxu0 0.0
    %832 = vmatprep.subr.mxu0 0.0
    %833 = vmatpush1.msra.mxu0 0.0
    %834 = vmatprep.subr.mxu0 0.0
    %835 = vmatpush1.msra.mxu0 0.0
    %836 = vmatprep.subr.mxu0 0.0
    %837 = vmatpush1.msra.mxu0 0.0
    %838 = vmatprep.subr.mxu0 0.0
    %839 = vmatpush1.msra.mxu0 0.0
    %840 = vmatprep.subr.mxu0 0.0
    %841 = vmatpush1.msra.mxu0 0.0
    %842 = vmatprep.subr.mxu0 0.0
    %843 = vmatpush1.msra.mxu0 0.0
    %844 = vmatprep.subr.mxu0 0.0
    %845 = vmatpush1.msra.mxu0 0.0
    %846 = vmatprep.subr.mxu0 0.0
    %847 = vmatpush1.msra.mxu0 0.0
    %848 = vmatprep.subr.mxu0 0.0
    %849 = vmatpush1.msra.mxu0 0.0
    %850 = vmatprep.subr.mxu0 0.0
    %851 = vmatpush1.msra.mxu0 0.0
    %852 = vmatprep.subr.mxu0 0.0
    %853 = vmatpush1.msra.mxu0 0.0
    %854 = vmatprep.mubr.f32.mxu0 0.0
    %v855 = vand.u32 %v323, 4294901760
    %856 = vmatmul.mubr.f32.gmra.mrb[0].mxu0 %v855
    %v857 = vpop.f32.mrb[0].mxu0
    %v858 = vadd.f32 %v744, %v857
    %v859 = vpop.f32.mrb[0].mxu0
    %860 = vmatprep.mubr.f32.mxu0 0.0
    %v861 = vand.u32 %v326, 4294901760
    %862 = vmatmul.mubr.f32.gmra.mrb[0].mxu0 %v861
    %v863 = vpop.f32.mrb[0].mxu0
    %v864 = vadd.f32 %v752, %v863
    %v865 = vpop.f32.mrb[0].mxu0
    %866 = vmatprep.mubr.f32.mxu0 0.0
    %v867 = vand.u32 %v329, 4294901760
    %868 = vmatmul.mubr.f32.gmra.mrb[0].mxu0 %v867
    %v869 = vpop.f32.mrb[0].mxu0
    %v870 = vadd.f32 %v760, %v869
    %v871 = vpop.f32.mrb[0].mxu0
    %872 = vmatprep.mubr.f32.mxu0 0.0
    %v873 = vand.u32 %v332, 4294901760
    %874 = vmatmul.mubr.f32.gmra.mrb[0].mxu0 %v873
    %v875 = vpop.f32.mrb[0].mxu0
    %v876 = vadd.f32 %v768, %v875
    %v877 = vpop.f32.mrb[0].mxu0
    %878 = vdwg.mxu0
    %879 = vmatprep.subr.mxu0 0.0
    %880 = vmatpush1.msra.mxu0 %v59
    %881 = vmatprep.subr.mxu0 0.0
    %882 = vmatpush1.msra.mxu0 %v60
    %883 = vmatprep.subr.mxu0 0.0
    %884 = vmatpush1.msra.mxu0 %v61
    %885 = vmatprep.subr.mxu0 0.0
    %886 = vmatpush1.msra.mxu0 %v62
    %887 = vmatprep.subr.mxu0 0.0
    %888 = vmatpush1.msra.mxu0 %v63
    %889 = vmatprep.subr.mxu0 0.0
    %890 = vmatpush1.msra.mxu0 %v64
    %891 = vmatprep.subr.mxu0 0.0
    %892 = vmatpush1.msra.mxu0 %v65
    %893 = vmatprep.subr.mxu0 0.0
    %894 = vmatpush1.msra.mxu0 %v66
    %895 = vmatprep.subr.mxu0 0.0
    %v896 = vand.u32 %v336, 4294901760
    %897 = vmatpush1.msra.mxu0 %v896
    %898 = vmatprep.subr.mxu0 0.0
    %899 = vmatpush1.msra.mxu0 0.0
    %900 = vmatprep.subr.mxu0 0.0
    %901 = vmatpush1.msra.mxu0 0.0
    %902 = vmatprep.subr.mxu0 0.0
    %903 = vmatpush1.msra.mxu0 0.0
    %904 = vmatprep.subr.mxu0 0.0
    %905 = vmatpush1.msra.mxu0 0.0
    %906 = vmatprep.subr.mxu0 0.0
    %907 = vmatpush1.msra.mxu0 0.0
    %908 = vmatprep.subr.mxu0 0.0
    %909 = vmatpush1.msra.mxu0 0.0
    %910 = vmatprep.subr.mxu0 0.0
    %911 = vmatpush1.msra.mxu0 0.0
    %912 = vmatprep.subr.mxu0 0.0
    %913 = vmatpush1.msra.mxu0 0.0
    %914 = vmatprep.subr.mxu0 0.0
    %915 = vmatpush1.msra.mxu0 0.0
    %916 = vmatprep.subr.mxu0 0.0
    %917 = vmatpush1.msra.mxu0 0.0
    %918 = vmatprep.subr.mxu0 0.0
    %919 = vmatpush1.msra.mxu0 0.0
    %920 = vmatprep.subr.mxu0 0.0
    %921 = vmatpush1.msra.mxu0 0.0
    %922 = vmatprep.subr.mxu0 0.0
    %923 = vmatpush1.msra.mxu0 0.0
    %924 = vmatprep.subr.mxu0 0.0
    %925 = vmatpush1.msra.mxu0 0.0
    %926 = vmatprep.subr.mxu0 0.0
    %927 = vmatpush1.msra.mxu0 0.0
    %928 = vmatprep.subr.mxu0 0.0
    %929 = vmatpush1.msra.mxu0 0.0
    %930 = vmatprep.subr.mxu0 0.0
    %931 = vmatpush1.msra.mxu0 0.0
    %932 = vmatprep.subr.mxu0 0.0
    %933 = vmatpush1.msra.mxu0 0.0
    %934 = vmatprep.subr.mxu0 0.0
    %935 = vmatpush1.msra.mxu0 0.0
    %936 = vmatprep.subr.mxu0 0.0
    %937 = vmatpush1.msra.mxu0 0.0
    %938 = vmatprep.subr.mxu0 0.0
    %939 = vmatpush1.msra.mxu0 0.0
    %940 = vmatprep.subr.mxu0 0.0
    %941 = vmatpush1.msra.mxu0 0.0
    %942 = vmatprep.subr.mxu0 0.0
    %943 = vmatpush1.msra.mxu0 0.0
    %944 = vmatprep.mubr.f32.mxu0 0.0
    %v945 = vand.u32 %v323, 4294901760
    %946 = vmatmul.mubr.f32.gmra.mrb[0].mxu0 %v945
    %v947 = vpop.f32.mrb[0].mxu0
    %v948 = vadd.f32 %v858, %v947
    %v949 = vpop.f32.mrb[0].mxu0
    %950 = vmatprep.mubr.f32.mxu0 0.0
    %v951 = vand.u32 %v326, 4294901760
    %952 = vmatmul.mubr.f32.gmra.mrb[0].mxu0 %v951
    %v953 = vpop.f32.mrb[0].mxu0
    %v954 = vadd.f32 %v864, %v953
    %v955 = vpop.f32.mrb[0].mxu0
    %956 = vmatprep.mubr.f32.mxu0 0.0
    %v957 = vand.u32 %v329, 4294901760
    %958 = vmatmul.mubr.f32.gmra.mrb[0].mxu0 %v957
    %v959 = vpop.f32.mrb[0].mxu0
    %v960 = vadd.f32 %v870, %v959
    %v961 = vpop.f32.mrb[0].mxu0
    %962 = vmatprep.mubr.f32.mxu0 0.0
    %v963 = vand.u32 %v332, 4294901760
    %964 = vmatmul.mubr.f32.gmra.mrb[0].mxu0 %v963
    %v965 = vpop.f32.mrb[0].mxu0
    %v966 = vadd.f32 %v876, %v965
    %v967 = vpop.f32.mrb[0].mxu0
    %968 = vdwg.mxu0
    %v970 = vsel %vm334, %v316, 0
    %972 = vmatprep.subr.mxu0 0.0
    %v973 = vand.u32 %v308, 4294901760
    %974 = vmatpush1.msra.mxu0 %v973
    %975 = vmatprep.subr.mxu0 0.0
    %v976 = vand.u32 %v309, 4294901760
    %977 = vmatpush1.msra.mxu0 %v976
    %978 = vmatprep.subr.mxu0 0.0
    %v979 = vand.u32 %v310, 4294901760
    %980 = vmatpush1.msra.mxu0 %v979
    %981 = vmatprep.subr.mxu0 0.0
    %v982 = vand.u32 %v311, 4294901760
    %983 = vmatpush1.msra.mxu0 %v982
    %984 = vmatprep.subr.mxu0 0.0
    %v985 = vand.u32 %v312, 4294901760
    %986 = vmatpush1.msra.mxu0 %v985
    %987 = vmatprep.subr.mxu0 0.0
    %v988 = vand.u32 %v313, 4294901760
    %989 = vmatpush1.msra.mxu0 %v988
    %990 = vmatprep.subr.mxu0 0.0
    %v991 = vand.u32 %v314, 4294901760
    %992 = vmatpush1.msra.mxu0 %v991
    %993 = vmatprep.subr.mxu0 0.0
    %v994 = vand.u32 %v315, 4294901760
    %995 = vmatpush1.msra.mxu0 %v994
    %996 = vmatprep.subr.mxu0 0.0
    %v997 = vand.u32 %v970, 4294901760
    %998 = vmatpush1.msra.mxu0 %v997
    %999 = vmatprep.subr.mxu0 0.0
    %1000 = vmatpush1.msra.mxu0 0.0
    %1001 = vmatprep.subr.mxu0 0.0
    %1002 = vmatpush1.msra.mxu0 0.0
    %1003 = vmatprep.subr.mxu0 0.0
    %1004 = vmatpush1.msra.mxu0 0.0
    %1005 = vmatprep.subr.mxu0 0.0
    %1006 = vmatpush1.msra.mxu0 0.0
    %1007 = vmatprep.subr.mxu0 0.0
    %1008 = vmatpush1.msra.mxu0 0.0
    %1009 = vmatprep.subr.mxu0 0.0
    %1010 = vmatpush1.msra.mxu0 0.0
    %1011 = vmatprep.subr.mxu0 0.0
    %1012 = vmatpush1.msra.mxu0 0.0
    %1013 = vmatprep.subr.mxu0 0.0
    %1014 = vmatpush1.msra.mxu0 0.0
    %1015 = vmatprep.subr.mxu0 0.0
    %1016 = vmatpush1.msra.mxu0 0.0
    %1017 = vmatprep.subr.mxu0 0.0
    %1018 = vmatpush1.msra.mxu0 0.0
    %1019 = vmatprep.subr.mxu0 0.0
    %1020 = vmatpush1.msra.mxu0 0.0
    %1021 = vmatprep.subr.mxu0 0.0
    %1022 = vmatpush1.msra.mxu0 0.0
    %1023 = vmatprep.subr.mxu0 0.0
    %1024 = vmatpush1.msra.mxu0 0.0
    %1025 = vmatprep.subr.mxu0 0.0
    %1026 = vmatpush1.msra.mxu0 0.0
    %1027 = vmatprep.subr.mxu0 0.0
    %1028 = vmatpush1.msra.mxu0 0.0
    %1029 = vmatprep.subr.mxu0 0.0
    %1030 = vmatpush1.msra.mxu0 0.0
    %1031 = vmatprep.subr.mxu0 0.0
    %1032 = vmatpush1.msra.mxu0 0.0
    %1033 = vmatprep.subr.mxu0 0.0
    %1034 = vmatpush1.msra.mxu0 0.0
    %1035 = vmatprep.subr.mxu0 0.0
    %1036 = vmatpush1.msra.mxu0 0.0
    %1037 = vmatprep.subr.mxu0 0.0
    %1038 = vmatpush1.msra.mxu0 0.0
    %1039 = vmatprep.subr.mxu0 0.0
    %1040 = vmatpush1.msra.mxu0 0.0
    %1041 = vmatprep.subr.mxu0 0.0
    %1042 = vmatpush1.msra.mxu0 0.0
    %1043 = vmatprep.subr.mxu0 0.0
    %1044 = vmatpush1.msra.mxu0 0.0
    %1045 = vmatprep.mubr.f32.mxu0 0.0
    %v1046 = vand.u32 %v323, 4294901760
    %v1047 = vsub.f32 %v323, %v1046
    %v1048 = vand.u32 %v1047, 4294901760
    %v1049 = vsub.f32 %v1047, %v1048
    %v1050 = vand.u32 %v1049, 4294901760
    %1051 = vmatmul.mubr.f32.gmra.mrb[0].mxu0 %v1050
    %v1052 = vpop.f32.mrb[0].mxu0
    %v1053 = vadd.f32 0.0, %v1052
    %v1054 = vpop.f32.mrb[0].mxu0
    %1055 = vmatprep.mubr.f32.mxu0 0.0
    %v1056 = vand.u32 %v326, 4294901760
    %v1057 = vsub.f32 %v326, %v1056
    %v1058 = vand.u32 %v1057, 4294901760
    %v1059 = vsub.f32 %v1057, %v1058
    %v1060 = vand.u32 %v1059, 4294901760
    %1061 = vmatmul.mubr.f32.gmra.mrb[0].mxu0 %v1060
    %v1062 = vpop.f32.mrb[0].mxu0
    %v1063 = vadd.f32 0.0, %v1062
    %v1064 = vpop.f32.mrb[0].mxu0
    %1065 = vmatprep.mubr.f32.mxu0 0.0
    %v1066 = vand.u32 %v329, 4294901760
    %v1067 = vsub.f32 %v329, %v1066
    %v1068 = vand.u32 %v1067, 4294901760
    %v1069 = vsub.f32 %v1067, %v1068
    %v1070 = vand.u32 %v1069, 4294901760
    %1071 = vmatmul.mubr.f32.gmra.mrb[0].mxu0 %v1070
    %v1072 = vpop.f32.mrb[0].mxu0
    %v1073 = vadd.f32 0.0, %v1072
    %v1074 = vpop.f32.mrb[0].mxu0
    %1075 = vmatprep.mubr.f32.mxu0 0.0
    %v1076 = vand.u32 %v332, 4294901760
    %v1077 = vsub.f32 %v332, %v1076
    %v1078 = vand.u32 %v1077, 4294901760
    %v1079 = vsub.f32 %v1077, %v1078
    %v1080 = vand.u32 %v1079, 4294901760
    %1081 = vmatmul.mubr.f32.gmra.mrb[0].mxu0 %v1080
    %v1082 = vpop.f32.mrb[0].mxu0
    %v1083 = vadd.f32 0.0, %v1082
    %v1084 = vpop.f32.mrb[0].mxu0
    %1085 = vdwg.mxu0
    %1086 = vmatprep.subr.mxu0 0.0
    %v1087 = vand.u32 %v308, 4294901760
    %v1088 = vsub.f32 %v308, %v1087
    %v1089 = vand.u32 %v1088, 4294901760
    %v1090 = vsub.f32 %v1088, %v1089
    %v1091 = vand.u32 %v1090, 4294901760
    %1092 = vmatpush1.msra.mxu0 %v1091
    %1093 = vmatprep.subr.mxu0 0.0
    %v1094 = vand.u32 %v309, 4294901760
    %v1095 = vsub.f32 %v309, %v1094
    %v1096 = vand.u32 %v1095, 4294901760
    %v1097 = vsub.f32 %v1095, %v1096
    %v1098 = vand.u32 %v1097, 4294901760
    %1099 = vmatpush1.msra.mxu0 %v1098
    %1100 = vmatprep.subr.mxu0 0.0
    %v1101 = vand.u32 %v310, 4294901760
    %v1102 = vsub.f32 %v310, %v1101
    %v1103 = vand.u32 %v1102, 4294901760
    %v1104 = vsub.f32 %v1102, %v1103
    %v1105 = vand.u32 %v1104, 4294901760
    %1106 = vmatpush1.msra.mxu0 %v1105
    %1107 = vmatprep.subr.mxu0 0.0
    %v1108 = vand.u32 %v311, 4294901760
    %v1109 = vsub.f32 %v311, %v1108
    %v1110 = vand.u32 %v1109, 4294901760
    %v1111 = vsub.f32 %v1109, %v1110
    %v1112 = vand.u32 %v1111, 4294901760
    %1113 = vmatpush1.msra.mxu0 %v1112
    %1114 = vmatprep.subr.mxu0 0.0
    %v1115 = vand.u32 %v312, 4294901760
    %v1116 = vsub.f32 %v312, %v1115
    %v1117 = vand.u32 %v1116, 4294901760
    %v1118 = vsub.f32 %v1116, %v1117
    %v1119 = vand.u32 %v1118, 4294901760
    %1120 = vmatpush1.msra.mxu0 %v1119
    %1121 = vmatprep.subr.mxu0 0.0
    %v1122 = vand.u32 %v313, 4294901760
    %v1123 = vsub.f32 %v313, %v1122
    %v1124 = vand.u32 %v1123, 4294901760
    %v1125 = vsub.f32 %v1123, %v1124
    %v1126 = vand.u32 %v1125, 4294901760
    %1127 = vmatpush1.msra.mxu0 %v1126
    %1128 = vmatprep.subr.mxu0 0.0
    %v1129 = vand.u32 %v314, 4294901760
    %v1130 = vsub.f32 %v314, %v1129
    %v1131 = vand.u32 %v1130, 4294901760
    %v1132 = vsub.f32 %v1130, %v1131
    %v1133 = vand.u32 %v1132, 4294901760
    %1134 = vmatpush1.msra.mxu0 %v1133
    %1135 = vmatprep.subr.mxu0 0.0
    %v1136 = vand.u32 %v315, 4294901760
    %v1137 = vsub.f32 %v315, %v1136
    %v1138 = vand.u32 %v1137, 4294901760
    %v1139 = vsub.f32 %v1137, %v1138
    %v1140 = vand.u32 %v1139, 4294901760
    %1141 = vmatpush1.msra.mxu0 %v1140
    %1142 = vmatprep.subr.mxu0 0.0
    %v1143 = vand.u32 %v970, 4294901760
    %v1144 = vsub.f32 %v970, %v1143
    %v1145 = vand.u32 %v1144, 4294901760
    %v1146 = vsub.f32 %v1144, %v1145
    %v1147 = vand.u32 %v1146, 4294901760
    %1148 = vmatpush1.msra.mxu0 %v1147
    %1149 = vmatprep.subr.mxu0 0.0
    %1150 = vmatpush1.msra.mxu0 0.0
    %1151 = vmatprep.subr.mxu0 0.0
    %1152 = vmatpush1.msra.mxu0 0.0
    %1153 = vmatprep.subr.mxu0 0.0
    %1154 = vmatpush1.msra.mxu0 0.0
    %1155 = vmatprep.subr.mxu0 0.0
    %1156 = vmatpush1.msra.mxu0 0.0
    %1157 = vmatprep.subr.mxu0 0.0
    %1158 = vmatpush1.msra.mxu0 0.0
    %1159 = vmatprep.subr.mxu0 0.0
    %1160 = vmatpush1.msra.mxu0 0.0
    %1161 = vmatprep.subr.mxu0 0.0
    %1162 = vmatpush1.msra.mxu0 0.0
    %1163 = vmatprep.subr.mxu0 0.0
    %1164 = vmatpush1.msra.mxu0 0.0
    %1165 = vmatprep.subr.mxu0 0.0
    %1166 = vmatpush1.msra.mxu0 0.0
    %1167 = vmatprep.subr.mxu0 0.0
    %1168 = vmatpush1.msra.mxu0 0.0
    %1169 = vmatprep.subr.mxu0 0.0
    %1170 = vmatpush1.msra.mxu0 0.0
    %1171 = vmatprep.subr.mxu0 0.0
    %1172 = vmatpush1.msra.mxu0 0.0
    %1173 = vmatprep.subr.mxu0 0.0
    %1174 = vmatpush1.msra.mxu0 0.0
    %1175 = vmatprep.subr.mxu0 0.0
    %1176 = vmatpush1.msra.mxu0 0.0
    %1177 = vmatprep.subr.mxu0 0.0
    %1178 = vmatpush1.msra.mxu0 0.0
    %1179 = vmatprep.subr.mxu0 0.0
    %1180 = vmatpush1.msra.mxu0 0.0
    %1181 = vmatprep.subr.mxu0 0.0
    %1182 = vmatpush1.msra.mxu0 0.0
    %1183 = vmatprep.subr.mxu0 0.0
    %1184 = vmatpush1.msra.mxu0 0.0
    %1185 = vmatprep.subr.mxu0 0.0
    %1186 = vmatpush1.msra.mxu0 0.0
    %1187 = vmatprep.subr.mxu0 0.0
    %1188 = vmatpush1.msra.mxu0 0.0
    %1189 = vmatprep.subr.mxu0 0.0
    %1190 = vmatpush1.msra.mxu0 0.0
    %1191 = vmatprep.subr.mxu0 0.0
    %1192 = vmatpush1.msra.mxu0 0.0
    %1193 = vmatprep.subr.mxu0 0.0
    %1194 = vmatpush1.msra.mxu0 0.0
    %1195 = vmatprep.mubr.f32.mxu0 0.0
    %v1196 = vand.u32 %v323, 4294901760
    %1197 = vmatmul.mubr.f32.gmra.mrb[0].mxu0 %v1196
    %v1198 = vpop.f32.mrb[0].mxu0
    %v1199 = vadd.f32 %v1053, %v1198
    %v1200 = vpop.f32.mrb[0].mxu0
    %1201 = vmatprep.mubr.f32.mxu0 0.0
    %v1202 = vand.u32 %v326, 4294901760
    %1203 = vmatmul.mubr.f32.gmra.mrb[0].mxu0 %v1202
    %v1204 = vpop.f32.mrb[0].mxu0
    %v1205 = vadd.f32 %v1063, %v1204
    %v1206 = vpop.f32.mrb[0].mxu0
    %1207 = vmatprep.mubr.f32.mxu0 0.0
    %v1208 = vand.u32 %v329, 4294901760
    %1209 = vmatmul.mubr.f32.gmra.mrb[0].mxu0 %v1208
    %v1210 = vpop.f32.mrb[0].mxu0
    %v1211 = vadd.f32 %v1073, %v1210
    %v1212 = vpop.f32.mrb[0].mxu0
    %1213 = vmatprep.mubr.f32.mxu0 0.0
    %v1214 = vand.u32 %v332, 4294901760
    %1215 = vmatmul.mubr.f32.gmra.mrb[0].mxu0 %v1214
    %v1216 = vpop.f32.mrb[0].mxu0
    %v1217 = vadd.f32 %v1083, %v1216
    %v1218 = vpop.f32.mrb[0].mxu0
    %1219 = vdwg.mxu0
    %1220 = vmatprep.subr.mxu0 0.0
    %v1221 = vand.u32 %v308, 4294901760
    %v1222 = vsub.f32 %v308, %v1221
    %1223 = vmatpush1.msra.mxu0 %v1222
    %1224 = vmatprep.subr.mxu0 0.0
    %v1225 = vand.u32 %v309, 4294901760
    %v1226 = vsub.f32 %v309, %v1225
    %1227 = vmatpush1.msra.mxu0 %v1226
    %1228 = vmatprep.subr.mxu0 0.0
    %v1229 = vand.u32 %v310, 4294901760
    %v1230 = vsub.f32 %v310, %v1229
    %1231 = vmatpush1.msra.mxu0 %v1230
    %1232 = vmatprep.subr.mxu0 0.0
    %v1233 = vand.u32 %v311, 4294901760
    %v1234 = vsub.f32 %v311, %v1233
    %1235 = vmatpush1.msra.mxu0 %v1234
    %1236 = vmatprep.subr.mxu0 0.0
    %v1237 = vand.u32 %v312, 4294901760
    %v1238 = vsub.f32 %v312, %v1237
    %1239 = vmatpush1.msra.mxu0 %v1238
    %1240 = vmatprep.subr.mxu0 0.0
    %v1241 = vand.u32 %v313, 4294901760
    %v1242 = vsub.f32 %v313, %v1241
    %1243 = vmatpush1.msra.mxu0 %v1242
    %1244 = vmatprep.subr.mxu0 0.0
    %v1245 = vand.u32 %v314, 4294901760
    %v1246 = vsub.f32 %v314, %v1245
    %1247 = vmatpush1.msra.mxu0 %v1246
    %1248 = vmatprep.subr.mxu0 0.0
    %v1249 = vand.u32 %v315, 4294901760
    %v1250 = vsub.f32 %v315, %v1249
    %1251 = vmatpush1.msra.mxu0 %v1250
    %1252 = vmatprep.subr.mxu0 0.0
    %v1253 = vand.u32 %v970, 4294901760
    %v1254 = vsub.f32 %v970, %v1253
    %1255 = vmatpush1.msra.mxu0 %v1254
    %1256 = vmatprep.subr.mxu0 0.0
    %1257 = vmatpush1.msra.mxu0 0.0
    %1258 = vmatprep.subr.mxu0 0.0
    %1259 = vmatpush1.msra.mxu0 0.0
    %1260 = vmatprep.subr.mxu0 0.0
    %1261 = vmatpush1.msra.mxu0 0.0
    %1262 = vmatprep.subr.mxu0 0.0
    %1263 = vmatpush1.msra.mxu0 0.0
    %1264 = vmatprep.subr.mxu0 0.0
    %1265 = vmatpush1.msra.mxu0 0.0
    %1266 = vmatprep.subr.mxu0 0.0
    %1267 = vmatpush1.msra.mxu0 0.0
    %1268 = vmatprep.subr.mxu0 0.0
    %1269 = vmatpush1.msra.mxu0 0.0
    %1270 = vmatprep.subr.mxu0 0.0
    %1271 = vmatpush1.msra.mxu0 0.0
    %1272 = vmatprep.subr.mxu0 0.0
    %1273 = vmatpush1.msra.mxu0 0.0
    %1274 = vmatprep.subr.mxu0 0.0
    %1275 = vmatpush1.msra.mxu0 0.0
    %1276 = vmatprep.subr.mxu0 0.0
    %1277 = vmatpush1.msra.mxu0 0.0
    %1278 = vmatprep.subr.mxu0 0.0
    %1279 = vmatpush1.msra.mxu0 0.0
    %1280 = vmatprep.subr.mxu0 0.0
    %1281 = vmatpush1.msra.mxu0 0.0
    %1282 = vmatprep.subr.mxu0 0.0
    %1283 = vmatpush1.msra.mxu0 0.0
    %1284 = vmatprep.subr.mxu0 0.0
    %1285 = vmatpush1.msra.mxu0 0.0
    %1286 = vmatprep.subr.mxu0 0.0
    %1287 = vmatpush1.msra.mxu0 0.0
    %1288 = vmatprep.subr.mxu0 0.0
    %1289 = vmatpush1.msra.mxu0 0.0
    %1290 = vmatprep.subr.mxu0 0.0
    %1291 = vmatpush1.msra.mxu0 0.0
    %1292 = vmatprep.subr.mxu0 0.0
    %1293 = vmatpush1.msra.mxu0 0.0
    %1294 = vmatprep.subr.mxu0 0.0
    %1295 = vmatpush1.msra.mxu0 0.0
    %1296 = vmatprep.subr.mxu0 0.0
    %1297 = vmatpush1.msra.mxu0 0.0
    %1298 = vmatprep.subr.mxu0 0.0
    %1299 = vmatpush1.msra.mxu0 0.0
    %1300 = vmatprep.subr.mxu0 0.0
    %1301 = vmatpush1.msra.mxu0 0.0
    %1302 = vmatprep.mubr.f32.mxu0 0.0
    %v1303 = vand.u32 %v323, 4294901760
    %v1304 = vsub.f32 %v323, %v1303
    %1305 = vmatmul.mubr.f32.gmra.mrb[0].mxu0 %v1304
    %v1306 = vpop.f32.mrb[0].mxu0
    %v1307 = vadd.f32 %v1199, %v1306
    %v1308 = vpop.f32.mrb[0].mxu0
    %1309 = vmatprep.mubr.f32.mxu0 0.0
    %v1310 = vand.u32 %v326, 4294901760
    %v1311 = vsub.f32 %v326, %v1310
    %1312 = vmatmul.mubr.f32.gmra.mrb[0].mxu0 %v1311
    %v1313 = vpop.f32.mrb[0].mxu0
    %v1314 = vadd.f32 %v1205, %v1313
    %v1315 = vpop.f32.mrb[0].mxu0
    %1316 = vmatprep.mubr.f32.mxu0 0.0
    %v1317 = vand.u32 %v329, 4294901760
    %v1318 = vsub.f32 %v329, %v1317
    %1319 = vmatmul.mubr.f32.gmra.mrb[0].mxu0 %v1318
    %v1320 = vpop.f32.mrb[0].mxu0
    %v1321 = vadd.f32 %v1211, %v1320
    %v1322 = vpop.f32.mrb[0].mxu0
    %1323 = vmatprep.mubr.f32.mxu0 0.0
    %v1324 = vand.u32 %v332, 4294901760
    %v1325 = vsub.f32 %v332, %v1324
    %1326 = vmatmul.mubr.f32.gmra.mrb[0].mxu0 %v1325
    %v1327 = vpop.f32.mrb[0].mxu0
    %v1328 = vadd.f32 %v1217, %v1327
    %v1329 = vpop.f32.mrb[0].mxu0
    %1330 = vdwg.mxu0
    %1331 = vmatprep.subr.mxu0 0.0
    %v1332 = vand.u32 %v308, 4294901760
    %1333 = vmatpush1.msra.mxu0 %v1332
    %1334 = vmatprep.subr.mxu0 0.0
    %v1335 = vand.u32 %v309, 4294901760
    %1336 = vmatpush1.msra.mxu0 %v1335
    %1337 = vmatprep.subr.mxu0 0.0
    %v1338 = vand.u32 %v310, 4294901760
    %1339 = vmatpush1.msra.mxu0 %v1338
    %1340 = vmatprep.subr.mxu0 0.0
    %v1341 = vand.u32 %v311, 4294901760
    %1342 = vmatpush1.msra.mxu0 %v1341
    %1343 = vmatprep.subr.mxu0 0.0
    %v1344 = vand.u32 %v312, 4294901760
    %1345 = vmatpush1.msra.mxu0 %v1344
    %1346 = vmatprep.subr.mxu0 0.0
    %v1347 = vand.u32 %v313, 4294901760
    %1348 = vmatpush1.msra.mxu0 %v1347
    %1349 = vmatprep.subr.mxu0 0.0
    %v1350 = vand.u32 %v314, 4294901760
    %1351 = vmatpush1.msra.mxu0 %v1350
    %1352 = vmatprep.subr.mxu0 0.0
    %v1353 = vand.u32 %v315, 4294901760
    %1354 = vmatpush1.msra.mxu0 %v1353
    %1355 = vmatprep.subr.mxu0 0.0
    %v1356 = vand.u32 %v970, 4294901760
    %1357 = vmatpush1.msra.mxu0 %v1356
    %1358 = vmatprep.subr.mxu0 0.0
    %1359 = vmatpush1.msra.mxu0 0.0
    %1360 = vmatprep.subr.mxu0 0.0
    %1361 = vmatpush1.msra.mxu0 0.0
    %1362 = vmatprep.subr.mxu0 0.0
    %1363 = vmatpush1.msra.mxu0 0.0
    %1364 = vmatprep.subr.mxu0 0.0
    %1365 = vmatpush1.msra.mxu0 0.0
    %1366 = vmatprep.subr.mxu0 0.0
    %1367 = vmatpush1.msra.mxu0 0.0
    %1368 = vmatprep.subr.mxu0 0.0
    %1369 = vmatpush1.msra.mxu0 0.0
    %1370 = vmatprep.subr.mxu0 0.0
    %1371 = vmatpush1.msra.mxu0 0.0
    %1372 = vmatprep.subr.mxu0 0.0
    %1373 = vmatpush1.msra.mxu0 0.0
    %1374 = vmatprep.subr.mxu0 0.0
    %1375 = vmatpush1.msra.mxu0 0.0
    %1376 = vmatprep.subr.mxu0 0.0
    %1377 = vmatpush1.msra.mxu0 0.0
    %1378 = vmatprep.subr.mxu0 0.0
    %1379 = vmatpush1.msra.mxu0 0.0
    %1380 = vmatprep.subr.mxu0 0.0
    %1381 = vmatpush1.msra.mxu0 0.0
    %1382 = vmatprep.subr.mxu0 0.0
    %1383 = vmatpush1.msra.mxu0 0.0
    %1384 = vmatprep.subr.mxu0 0.0
    %1385 = vmatpush1.msra.mxu0 0.0
    %1386 = vmatprep.subr.mxu0 0.0
    %1387 = vmatpush1.msra.mxu0 0.0
    %1388 = vmatprep.subr.mxu0 0.0
    %1389 = vmatpush1.msra.mxu0 0.0
    %1390 = vmatprep.subr.mxu0 0.0
    %1391 = vmatpush1.msra.mxu0 0.0
    %1392 = vmatprep.subr.mxu0 0.0
    %1393 = vmatpush1.msra.mxu0 0.0
    %1394 = vmatprep.subr.mxu0 0.0
    %1395 = vmatpush1.msra.mxu0 0.0
    %1396 = vmatprep.subr.mxu0 0.0
    %1397 = vmatpush1.msra.mxu0 0.0
    %1398 = vmatprep.subr.mxu0 0.0
    %1399 = vmatpush1.msra.mxu0 0.0
    %1400 = vmatprep.subr.mxu0 0.0
    %1401 = vmatpush1.msra.mxu0 0.0
    %1402 = vmatprep.subr.mxu0 0.0
    %1403 = vmatpush1.msra.mxu0 0.0
    %1404 = vmatprep.mubr.f32.mxu0 0.0
    %v1405 = vand.u32 %v323, 4294901760
    %v1406 = vsub.f32 %v323, %v1405
    %v1407 = vand.u32 %v1406, 4294901760
    %1408 = vmatmul.mubr.f32.gmra.mrb[0].mxu0 %v1407
    %v1409 = vpop.f32.mrb[0].mxu0
    %v1410 = vadd.f32 %v1307, %v1409
    %v1411 = vpop.f32.mrb[0].mxu0
    %1412 = vmatprep.mubr.f32.mxu0 0.0
    %v1413 = vand.u32 %v326, 4294901760
    %v1414 = vsub.f32 %v326, %v1413
    %v1415 = vand.u32 %v1414, 4294901760
    %1416 = vmatmul.mubr.f32.gmra.mrb[0].mxu0 %v1415
    %v1417 = vpop.f32.mrb[0].mxu0
    %v1418 = vadd.f32 %v1314, %v1417
    %v1419 = vpop.f32.mrb[0].mxu0
    %1420 = vmatprep.mubr.f32.mxu0 0.0
    %v1421 = vand.u32 %v329, 4294901760
    %v1422 = vsub.f32 %v329, %v1421
    %v1423 = vand.u32 %v1422, 4294901760
    %1424 = vmatmul.mubr.f32.gmra.mrb[0].mxu0 %v1423
    %v1425 = vpop.f32.mrb[0].mxu0
    %v1426 = vadd.f32 %v1321, %v1425
    %v1427 = vpop.f32.mrb[0].mxu0
    %1428 = vmatprep.mubr.f32.mxu0 0.0
    %v1429 = vand.u32 %v332, 4294901760
    %v1430 = vsub.f32 %v332, %v1429
    %v1431 = vand.u32 %v1430, 4294901760
    %1432 = vmatmul.mubr.f32.gmra.mrb[0].mxu0 %v1431
    %v1433 = vpop.f32.mrb[0].mxu0
    %v1434 = vadd.f32 %v1328, %v1433
    %v1435 = vpop.f32.mrb[0].mxu0
    %1436 = vdwg.mxu0
    %1437 = vmatprep.subr.mxu0 0.0
    %v1438 = vand.u32 %v308, 4294901760
    %v1439 = vsub.f32 %v308, %v1438
    %v1440 = vand.u32 %v1439, 4294901760
    %1441 = vmatpush1.msra.mxu0 %v1440
    %1442 = vmatprep.subr.mxu0 0.0
    %v1443 = vand.u32 %v309, 4294901760
    %v1444 = vsub.f32 %v309, %v1443
    %v1445 = vand.u32 %v1444, 4294901760
    %1446 = vmatpush1.msra.mxu0 %v1445
    %1447 = vmatprep.subr.mxu0 0.0
    %v1448 = vand.u32 %v310, 4294901760
    %v1449 = vsub.f32 %v310, %v1448
    %v1450 = vand.u32 %v1449, 4294901760
    %1451 = vmatpush1.msra.mxu0 %v1450
    %1452 = vmatprep.subr.mxu0 0.0
    %v1453 = vand.u32 %v311, 4294901760
    %v1454 = vsub.f32 %v311, %v1453
    %v1455 = vand.u32 %v1454, 4294901760
    %1456 = vmatpush1.msra.mxu0 %v1455
    %1457 = vmatprep.subr.mxu0 0.0
    %v1458 = vand.u32 %v312, 4294901760
    %v1459 = vsub.f32 %v312, %v1458
    %v1460 = vand.u32 %v1459, 4294901760
    %1461 = vmatpush1.msra.mxu0 %v1460
    %1462 = vmatprep.subr.mxu0 0.0
    %v1463 = vand.u32 %v313, 4294901760
    %v1464 = vsub.f32 %v313, %v1463
    %v1465 = vand.u32 %v1464, 4294901760
    %1466 = vmatpush1.msra.mxu0 %v1465
    %1467 = vmatprep.subr.mxu0 0.0
    %v1468 = vand.u32 %v314, 4294901760
    %v1469 = vsub.f32 %v314, %v1468
    %v1470 = vand.u32 %v1469, 4294901760
    %1471 = vmatpush1.msra.mxu0 %v1470
    %1472 = vmatprep.subr.mxu0 0.0
    %v1473 = vand.u32 %v315, 4294901760
    %v1474 = vsub.f32 %v315, %v1473
    %v1475 = vand.u32 %v1474, 4294901760
    %1476 = vmatpush1.msra.mxu0 %v1475
    %1477 = vmatprep.subr.mxu0 0.0
    %v1478 = vand.u32 %v970, 4294901760
    %v1479 = vsub.f32 %v970, %v1478
    %v1480 = vand.u32 %v1479, 4294901760
    %1481 = vmatpush1.msra.mxu0 %v1480
    %1482 = vmatprep.subr.mxu0 0.0
    %1483 = vmatpush1.msra.mxu0 0.0
    %1484 = vmatprep.subr.mxu0 0.0
    %1485 = vmatpush1.msra.mxu0 0.0
    %1486 = vmatprep.subr.mxu0 0.0
    %1487 = vmatpush1.msra.mxu0 0.0
    %1488 = vmatprep.subr.mxu0 0.0
    %1489 = vmatpush1.msra.mxu0 0.0
    %1490 = vmatprep.subr.mxu0 0.0
    %1491 = vmatpush1.msra.mxu0 0.0
    %1492 = vmatprep.subr.mxu0 0.0
    %1493 = vmatpush1.msra.mxu0 0.0
    %1494 = vmatprep.subr.mxu0 0.0
    %1495 = vmatpush1.msra.mxu0 0.0
    %1496 = vmatprep.subr.mxu0 0.0
    %1497 = vmatpush1.msra.mxu0 0.0
    %1498 = vmatprep.subr.mxu0 0.0
    %1499 = vmatpush1.msra.mxu0 0.0
    %1500 = vmatprep.subr.mxu0 0.0
    %1501 = vmatpush1.msra.mxu0 0.0
    %1502 = vmatprep.subr.mxu0 0.0
    %1503 = vmatpush1.msra.mxu0 0.0
    %1504 = vmatprep.subr.mxu0 0.0
    %1505 = vmatpush1.msra.mxu0 0.0
    %1506 = vmatprep.subr.mxu0 0.0
    %1507 = vmatpush1.msra.mxu0 0.0
    %1508 = vmatprep.subr.mxu0 0.0
    %1509 = vmatpush1.msra.mxu0 0.0
    %1510 = vmatprep.subr.mxu0 0.0
    %1511 = vmatpush1.msra.mxu0 0.0
    %1512 = vmatprep.subr.mxu0 0.0
    %1513 = vmatpush1.msra.mxu0 0.0
    %1514 = vmatprep.subr.mxu0 0.0
    %1515 = vmatpush1.msra.mxu0 0.0
    %1516 = vmatprep.subr.mxu0 0.0
    %1517 = vmatpush1.msra.mxu0 0.0
    %1518 = vmatprep.subr.mxu0 0.0
    %1519 = vmatpush1.msra.mxu0 0.0
    %1520 = vmatprep.subr.mxu0 0.0
    %1521 = vmatpush1.msra.mxu0 0.0
    %1522 = vmatprep.subr.mxu0 0.0
    %1523 = vmatpush1.msra.mxu0 0.0
    %1524 = vmatprep.subr.mxu0 0.0
    %1525 = vmatpush1.msra.mxu0 0.0
    %1526 = vmatprep.subr.mxu0 0.0
    %1527 = vmatpush1.msra.mxu0 0.0
    %1528 = vmatprep.mubr.f32.mxu0 0.0
    %v1529 = vand.u32 %v323, 4294901760
    %1530 = vmatmul.mubr.f32.gmra.mrb[0].mxu0 %v1529
    %v1531 = vpop.f32.mrb[0].mxu0
    %v1532 = vadd.f32 %v1410, %v1531
    %v1533 = vpop.f32.mrb[0].mxu0
    %1534 = vmatprep.mubr.f32.mxu0 0.0
    %v1535 = vand.u32 %v326, 4294901760
    %1536 = vmatmul.mubr.f32.gmra.mrb[0].mxu0 %v1535
    %v1537 = vpop.f32.mrb[0].mxu0
    %v1538 = vadd.f32 %v1418, %v1537
    %v1539 = vpop.f32.mrb[0].mxu0
    %1540 = vmatprep.mubr.f32.mxu0 0.0
    %v1541 = vand.u32 %v329, 4294901760
    %1542 = vmatmul.mubr.f32.gmra.mrb[0].mxu0 %v1541
    %v1543 = vpop.f32.mrb[0].mxu0
    %v1544 = vadd.f32 %v1426, %v1543
    %v1545 = vpop.f32.mrb[0].mxu0
    %1546 = vmatprep.mubr.f32.mxu0 0.0
    %v1547 = vand.u32 %v332, 4294901760
    %1548 = vmatmul.mubr.f32.gmra.mrb[0].mxu0 %v1547
    %v1549 = vpop.f32.mrb[0].mxu0
    %v1550 = vadd.f32 %v1434, %v1549
    %v1551 = vpop.f32.mrb[0].mxu0
    %1552 = vdwg.mxu0
    %1553 = vmatprep.subr.mxu0 0.0
    %v1554 = vand.u32 %v308, 4294901760
    %1555 = vmatpush1.msra.mxu0 %v1554
    %1556 = vmatprep.subr.mxu0 0.0
    %v1557 = vand.u32 %v309, 4294901760
    %1558 = vmatpush1.msra.mxu0 %v1557
    %1559 = vmatprep.subr.mxu0 0.0
    %v1560 = vand.u32 %v310, 4294901760
    %1561 = vmatpush1.msra.mxu0 %v1560
    %1562 = vmatprep.subr.mxu0 0.0
    %v1563 = vand.u32 %v311, 4294901760
    %1564 = vmatpush1.msra.mxu0 %v1563
    %1565 = vmatprep.subr.mxu0 0.0
    %v1566 = vand.u32 %v312, 4294901760
    %1567 = vmatpush1.msra.mxu0 %v1566
    %1568 = vmatprep.subr.mxu0 0.0
    %v1569 = vand.u32 %v313, 4294901760
    %1570 = vmatpush1.msra.mxu0 %v1569
    %1571 = vmatprep.subr.mxu0 0.0
    %v1572 = vand.u32 %v314, 4294901760
    %1573 = vmatpush1.msra.mxu0 %v1572
    %1574 = vmatprep.subr.mxu0 0.0
    %v1575 = vand.u32 %v315, 4294901760
    %1576 = vmatpush1.msra.mxu0 %v1575
    %1577 = vmatprep.subr.mxu0 0.0
    %v1578 = vand.u32 %v970, 4294901760
    %1579 = vmatpush1.msra.mxu0 %v1578
    %1580 = vmatprep.subr.mxu0 0.0
    %1581 = vmatpush1.msra.mxu0 0.0
    %1582 = vmatprep.subr.mxu0 0.0
    %1583 = vmatpush1.msra.mxu0 0.0
    %1584 = vmatprep.subr.mxu0 0.0
    %1585 = vmatpush1.msra.mxu0 0.0
    %1586 = vmatprep.subr.mxu0 0.0
    %1587 = vmatpush1.msra.mxu0 0.0
    %1588 = vmatprep.subr.mxu0 0.0
    %1589 = vmatpush1.msra.mxu0 0.0
    %1590 = vmatprep.subr.mxu0 0.0
    %1591 = vmatpush1.msra.mxu0 0.0
    %1592 = vmatprep.subr.mxu0 0.0
    %1593 = vmatpush1.msra.mxu0 0.0
    %1594 = vmatprep.subr.mxu0 0.0
    %1595 = vmatpush1.msra.mxu0 0.0
    %1596 = vmatprep.subr.mxu0 0.0
    %1597 = vmatpush1.msra.mxu0 0.0
    %1598 = vmatprep.subr.mxu0 0.0
    %1599 = vmatpush1.msra.mxu0 0.0
    %1600 = vmatprep.subr.mxu0 0.0
    %1601 = vmatpush1.msra.mxu0 0.0
    %1602 = vmatprep.subr.mxu0 0.0
    %1603 = vmatpush1.msra.mxu0 0.0
    %1604 = vmatprep.subr.mxu0 0.0
    %1605 = vmatpush1.msra.mxu0 0.0
    %1606 = vmatprep.subr.mxu0 0.0
    %1607 = vmatpush1.msra.mxu0 0.0
    %1608 = vmatprep.subr.mxu0 0.0
    %1609 = vmatpush1.msra.mxu0 0.0
    %1610 = vmatprep.subr.mxu0 0.0
    %1611 = vmatpush1.msra.mxu0 0.0
    %1612 = vmatprep.subr.mxu0 0.0
    %1613 = vmatpush1.msra.mxu0 0.0
    %1614 = vmatprep.subr.mxu0 0.0
    %1615 = vmatpush1.msra.mxu0 0.0
    %1616 = vmatprep.subr.mxu0 0.0
    %1617 = vmatpush1.msra.mxu0 0.0
    %1618 = vmatprep.subr.mxu0 0.0
    %1619 = vmatpush1.msra.mxu0 0.0
    %1620 = vmatprep.subr.mxu0 0.0
    %1621 = vmatpush1.msra.mxu0 0.0
    %1622 = vmatprep.subr.mxu0 0.0
    %1623 = vmatpush1.msra.mxu0 0.0
    %1624 = vmatprep.subr.mxu0 0.0
    %1625 = vmatpush1.msra.mxu0 0.0
    %1626 = vmatprep.mubr.f32.mxu0 0.0
    %v1627 = vand.u32 %v323, 4294901760
    %1628 = vmatmul.mubr.f32.gmra.mrb[0].mxu0 %v1627
    %v1629 = vpop.f32.mrb[0].mxu0
    %v1630 = vadd.f32 %v1532, %v1629
    %v1631 = vpop.f32.mrb[0].mxu0
    %1632 = vmatprep.mubr.f32.mxu0 0.0
    %v1633 = vand.u32 %v326, 4294901760
    %1634 = vmatmul.mubr.f32.gmra.mrb[0].mxu0 %v1633
    %v1635 = vpop.f32.mrb[0].mxu0
    %v1636 = vadd.f32 %v1538, %v1635
    %v1637 = vpop.f32.mrb[0].mxu0
    %1638 = vmatprep.mubr.f32.mxu0 0.0
    %v1639 = vand.u32 %v329, 4294901760
    %1640 = vmatmul.mubr.f32.gmra.mrb[0].mxu0 %v1639
    %v1641 = vpop.f32.mrb[0].mxu0
    %v1642 = vadd.f32 %v1544, %v1641
    %v1643 = vpop.f32.mrb[0].mxu0
    %1644 = vmatprep.mubr.f32.mxu0 0.0
    %v1645 = vand.u32 %v332, 4294901760
    %1646 = vmatmul.mubr.f32.gmra.mrb[0].mxu0 %v1645
    %v1647 = vpop.f32.mrb[0].mxu0
    %v1648 = vadd.f32 %v1550, %v1647
    %v1649 = vpop.f32.mrb[0].mxu0
    %1650 = vdwg.mxu0
    %v1651 = vmul.f32 %v948, %v1630
    %v1652 = vmul.f32 %v954, %v1636
    %v1653 = vmul.f32 %v960, %v1642
    %v1654 = vmul.f32 %v966, %v1648
    %vm1655 = vcmask 64512
    %v1656 = vsel %vm1655, %v1651, 0.0
    %v1657 = vsel %vm1655, %v1652, 0.0
    %v1658 = vadd.f32 %v1656, %v1657
    %v1659 = vsel %vm1655, %v1653, 0.0
    %v1660 = vadd.f32 %v1658, %v1659
    %v1661 = vsel %vm1655, %v1654, 0.0
    %v1662 = vadd.f32 %v1660, %v1661
    %v1663 = vrot.slane %v1662, 4
    %v1664 = vadd.f32 %v1662, %v1663
    %v1665 = vrot.slane %v1664, 2
    %v1666 = vadd.f32 %v1664, %v1665
    %v1667 = vrot.slane %v1666, 1
    %v1668 = vadd.f32 %v1666, %v1667
    %v1669 = vmul.f32 %v1668, 0.125
    %v1670 = vxor.u32 %v1669, 2147483648
    %v1671 = vmul.f32 %v1670, 1.442695
    %v1672 = vpow.pop %v1671
    %v1673 = vadd.f32 %v1672, 1.0
    %v1674 = vrcp.pop %v1673
    %v1675 = vmul.f32 1.0, %v1674
    %vm1676 = vcmask 57344
    %1677 = vst.msk [vmem:[#allocation5] sm:$0x1] %vm1676, %v1675
    %v1678 = vld [vmem:[%s3] sm:$0x1]
    %v1679 = vlog2.pop %v1675
    %v1680 = vmul.f32 %v1679, 0.6931472
    %v1681 = vmax.f32 %v1680, -100.0
    %v1682 = vsub.f32 1.0, %v1675
    %v1683 = vlog2.pop %v1682
    %v1684 = vmul.f32 %v1683, 0.6931472
    %v1685 = vmax.f32 %v1684, -100.0
    %v1686 = vmul.f32 %v1678, %v1681
    %v1687 = vsub.f32 1.0, %v1678
    %v1688 = vmul.f32 %v1687, %v1685
    %v1689 = vadd.f32 %v1686, %v1688
    %v1690 = vsub.f32 0.0, %v1689
    %v1691 = vsel %vm1676, %v1690, 0.0
    %1692 = vadd.xlane.f32.xlu0 %v1691
    %v1693 = vpop.xlane.xlu0 %1692
    %v1694 = vrot.slane %v1693, 4
    %v1695 = vadd.f32 %v1693, %v1694
    %v1696 = vrot.slane %v1695, 2
    %v1697 = vadd.f32 %v1695, %v1696
    %v1698 = vrot.slane %v1697, 1
    %v1699 = vadd.f32 %v1697, %v1698
    %s1700 = vtos %v1699
    %v1701 = vstv %s1700
    %v1702 = vrcp.pop 8.0
    %v1703 = vmul.f32 %v1701, %v1702
    %vm1704 = vcmask 0
    %1705 = vst.msk [vmem:[#allocation6] sm:$0x1] %vm1704, %v1703
    // Predicated region
    $region22: #{hop0_forward.1} parent=1 // pred_check
      _
    $region23: #{hop0_forward.1} parent=1 // pred_check_branch
      %1707 = sbr.rel (0) target = $region25
    $region24: #{hop0_forward.1} parent=1 // pred_region
      %s1709 = ssub.s32 16, 16
      %1710 = vsyncadd [#allocation4], %s1709
      %s1712 = sshll.u32 [#allocation5], 4
      %s1713 = int_to_ptr.vmem [resolvable:$true] %s1712
      %1715 = dma.vmem_to_hbm [thread:$0]  %s1713, 16, %s4, [#allocation4]
    $region25: #{hop0_forward.1} parent=1 // pred_fallthru
      _
    // Predicated region
    $region26: #{hop0_forward.1} parent=1 // pred_check
      _
    $region27: #{hop0_forward.1} parent=1 // pred_check_branch
      %1717 = sbr.rel (0) target = $region29
    $region28: #{hop0_forward.1} parent=1 // pred_region
      %s1719 = ssub.s32 16, 16
      %1720 = vsyncadd [#allocation7], %s1719
      %s1722 = sshll.u32 [#allocation6], 4
      %s1723 = int_to_ptr.vmem [resolvable:$true] %s1722
      %1725 = dma.vmem_to_hbm [thread:$0]  %s1723, 16, %s5, [#allocation7]
    $region29: #{hop0_forward.1} parent=1 // pred_fallthru
      _
    // Predicated region
    $region30: #{hop0_forward.1} parent=1 // pred_check
      _
    $region31: #{hop0_forward.1} parent=1 // pred_check_branch
      %1727 = sbr.rel (0) target = $region33
    $region32: #{hop0_forward.1} parent=1 // pred_region
      %1728 = dma.done [#allocation4], 16
    $region33: #{hop0_forward.1} parent=1 // pred_fallthru
      _
    // Predicated region
    $region34: #{hop0_forward.1} parent=1 // pred_check
      _
    $region35: #{hop0_forward.1} parent=1 // pred_check_branch
      %1730 = sbr.rel (0) target = $region37
    $region36: #{hop0_forward.1} parent=1 // pred_region
      %1731 = dma.done [#allocation7], 16
    $region37: #{hop0_forward.1} parent=1 // pred_fallthru
      _
    %1732 = vsyncpa [#allocation3], 1
    %1733 = vsyncpa [#allocation4], 1
    %1734 = vsyncpa [#allocation7], 1

</llo_original>
